<compile_context>
chip_gen: v7x
topology: tpu7x:2x2x1
jax: 0.10.0
libtpu: 0.0.40
codegen_flags: <defaults>
</compile_context>

<pallas_src>
import functools
import math

import jax
import jax.numpy as jnp
from jax.experimental import pallas as pl
from jax.experimental.pallas import tpu as pltpu


def _round_up(x, m):
    return (x + m - 1) // m * m


def _pick_contraction_tile(K, tk_max):
    """Largest 128-aligned tile <= tk_max that divides K; else the full K."""
    if K <= tk_max:
        return K
    t = (tk_max // 128) * 128
    while t >= 128:
        if K % t == 0:
            return t
        t -= 128
    return K  # no aligned divisor: single full-K block (correct, bigger VMEM)


def _pick_seq_tile(S, t_max):
    """Largest 8-aligned tile <= t_max that divides S; else the full S."""
    if S <= t_max:
        return S
    t = (t_max // 8) * 8
    while t >= 8:
        if S % t == 0:
            return t
        t -= 8
    return S


# --------------------------------------------------------------------------
# Tiled linear: out = x @ w (+ b), f32 MXU accumulator, no pad/slice copies
# --------------------------------------------------------------------------

def _linear_kernel(*refs, has_bias):
    if has_bias:
        x_ref, w_ref, b_ref, o_ref, acc_ref = refs
    else:
        x_ref, w_ref, o_ref, acc_ref = refs
        b_ref = None
    k = pl.program_id(2)

    @pl.when(k == 0)
    def _():
        acc_ref[...] = jnp.zeros_like(acc_ref)

    acc_ref[...] += jnp.dot(x_ref[...], w_ref[...],
                            preferred_element_type=jnp.float32)

    @pl.when(k == pl.num_programs(2) - 1)
    def _():
        r = acc_ref[...]
        if has_bias:
            r = r + b_ref[...]
        o_ref[...] = r.astype(o_ref.dtype)


def linear_pallas(x2, w, b=None, *, tm_max=512, tn_max=512, tk_max=512):
    """(M, K) @ (K, N) (+ (N,)) -> (M, N).  K tiles divide exactly (no
    contraction-tail garbage); M/N tails use Pallas partial blocks."""
    M, K = x2.shape
    _, N = w.shape

    tm = min(tm_max, _round_up(M, 8))
    tn = N if N <= tn_max else (tn_max // 128) * 128
    tk = _pick_contraction_tile(K, tk_max)

    grid = (pl.cdiv(M, tm), pl.cdiv(N, tn), pl.cdiv(K, tk))

    in_specs = [
        pl.BlockSpec((tm, tk), lambda i, j, k: (i, k)),   # x row tile
        pl.BlockSpec((tk, tn), lambda i, j, k: (k, j)),   # w tile
    ]
    operands = [x2, w]
    has_bias = b is not None
    if has_bias:
        in_specs.append(pl.BlockSpec((1, tn), lambda i, j, k: (0, j)))
        operands.append(b.reshape(1, N))

    return pl.pallas_call(
        functools.partial(_linear_kernel, has_bias=has_bias),
        out_shape=jax.ShapeDtypeStruct((M, N), x2.dtype),
        grid_spec=pltpu.PrefetchScalarGridSpec(
            num_scalar_prefetch=0,
            grid=grid,
            in_specs=in_specs,
            out_specs=pl.BlockSpec((tm, tn), lambda i, j, k: (i, j)),
            scratch_shapes=[pltpu.VMEM((tm, tn), jnp.float32)],
        ),
        compiler_params=pltpu.CompilerParams(
            dimension_semantics=("parallel", "parallel", "arbitrary"),
            vmem_limit_bytes=32 * 1024 * 1024),
    )(*operands)


# --------------------------------------------------------------------------
# Flash-style causal attention directly on the fused qkv activation
# --------------------------------------------------------------------------

def _flash_attn_kernel(q_ref, k_ref, v_ref, o_ref, m_ref, l_ref, acc_ref, *,
                       scale, G, Dh, tq, tkv, q_off, k_off, v_off):
    qi = pl.program_id(2)
    ki = pl.program_id(3)
    nk = pl.num_programs(3)

    @pl.when(ki == 0)
    def _():
        m_ref[...] = jnp.full_like(m_ref, -1e30)   # finite: avoids inf-inf NaNs
        l_ref[...] = jnp.zeros_like(l_ref)
        acc_ref[...] = jnp.zeros_like(acc_ref)

    q_start = qi * tq
    k_start = ki * tkv

    # Skip KV tiles that are entirely above the causal diagonal.
    @pl.when(k_start <= q_start + tq - 1)
    def _():
        # Causal mask built once per KV tile, shared by all heads in the group.
        row = q_start + jax.lax.broadcasted_iota(jnp.int32, (tq, tkv), 0)
        col = k_start + jax.lax.broadcasted_iota(jnp.int32, (tq, tkv), 1)
        keep = col <= row

        for g in range(G):
            q = q_ref[:, q_off + g * Dh:q_off + (g + 1) * Dh]
            q = q.astype(jnp.float32) * scale            # scale folded into q
            k = k_ref[:, k_off + g * Dh:k_off + (g + 1) * Dh].astype(jnp.float32)
            v = v_ref[:, v_off + g * Dh:v_off + (g + 1) * Dh]

            s = jax.lax.dot_general(q, k, (((1,), (1,)), ((), ())),
                                    preferred_element_type=jnp.float32)
            s = jnp.where(keep, s, -1e30)

            m_prev = m_ref[g]                             # (tq, 1)
            m_new = jnp.maximum(m_prev, jnp.max(s, axis=-1, keepdims=True))
            alpha = jnp.exp(m_prev - m_new)
            p = jnp.exp(s - m_new)                        # unnormalized probs
            l_ref[g] = alpha * l_ref[g] + jnp.sum(p, axis=-1, keepdims=True)
            acc_ref[g] = alpha * acc_ref[g] + jnp.dot(
                p.astype(v.dtype), v, preferred_element_type=jnp.float32)
            m_ref[g] = m_new

    @pl.when(ki == nk - 1)
    def _():
        # Deferred normalization: one EUP reciprocal per head, applied to the
        # (tq, Dh) accumulator instead of dividing the (tq, tkv) scores.
        for g in range(G):
            inv = pl.reciprocal(l_ref[g], approx=True)
            o_ref[:, g * Dh:(g + 1) * Dh] = (acc_ref[g] * inv).astype(o_ref.dtype)


def flash_attention_pallas(qkv, *, batch, seq, num_heads, head_dim, d_out,
                           tq_max=256, tkv_max=256):
    """qkv: (B*S, 3*d_out) fused [Q|K|V] activation -> ctx (B*S, d_out)."""
    B, S, H, Dh = batch, seq, num_heads, head_dim
    rows = B * S
    assert qkv.shape == (rows, 3 * d_out)
    scale = 1.0 / math.sqrt(Dh)

    # Head grouping: make the per-step lane width 128 when possible.
    if Dh % 128 == 0:
        G, col_mode = 1, True
    elif 128 % Dh == 0 and H % (128 // Dh) == 0:
        G, col_mode = 128 // Dh, True
    else:
        G, col_mode = H, False          # small models: all heads per step
    HG = H // G

    # Sequence tiles (divide S so row blocks never straddle a batch boundary).
    tq = _pick_seq_tile(S, tq_max)
    tkv = _pick_seq_tile(S, tkv_max)
    nq, nkv = S // tq, S // tkv

    if col_mode:
        win = G * Dh                                    # 128-aligned column block
        q_cb, k_cb, v_cb = 0, HG, 2 * HG                # column-block bases
        q_off = k_off = v_off = 0                       # offsets inside the block
    else:
        win = 3 * d_out                                 # full fused width
        q_cb = k_cb = v_cb = 0
        q_off, k_off, v_off = 0, d_out, 2 * d_out

    q_map = lambda b, hg, qi, ki: (b * nq + qi, q_cb + hg)
    k_map = lambda b, hg, qi, ki: (b * nkv + ki, k_cb + hg)
    v_map = lambda b, hg, qi, ki: (b * nkv + ki, v_cb + hg)
    o_map = lambda b, hg, qi, ki: (b * nq + qi, hg)

    kernel = functools.partial(
        _flash_attn_kernel, scale=scale, G=G, Dh=Dh, tq=tq, tkv=tkv,
        q_off=q_off, k_off=k_off, v_off=v_off)

    return pl.pallas_call(
        kernel,
        out_shape=jax.ShapeDtypeStruct((rows, d_out), qkv.dtype),
        grid_spec=pltpu.PrefetchScalarGridSpec(
            num_scalar_prefetch=0,
            grid=(B, HG, nq, nkv),
            in_specs=[
                pl.BlockSpec((tq, win), q_map),
                pl.BlockSpec((tkv, win), k_map),
                pl.BlockSpec((tkv, win), v_map),
            ],
            out_specs=pl.BlockSpec((tq, G * Dh), o_map),
            scratch_shapes=[
                pltpu.VMEM((G, tq, 1), jnp.float32),    # running max
                pltpu.VMEM((G, tq, 1), jnp.float32),    # running sum
                pltpu.VMEM((G, tq, Dh), jnp.float32),   # output accumulator
            ],
        ),
        compiler_params=pltpu.CompilerParams(
            dimension_semantics=("parallel", "parallel", "parallel", "arbitrary"),
            vmem_limit_bytes=32 * 1024 * 1024),
    )(qkv, qkv, qkv)


# --------------------------------------------------------------------------
# Full MultiHeadAttention forward
# --------------------------------------------------------------------------

@functools.partial(jax.jit, static_argnames=("num_heads",))
def multi_head_attention(x, wqkv, wo, bo, *, num_heads):
    B, S, d_in = x.shape
    d_out = wo.shape[1]
    head_dim = d_out // num_heads
    x2 = x.reshape(B * S, d_in)                     # free reshape

    # Fused QKV projection (qkv_bias=False): x streamed from HBM once.
    qkv = linear_pallas(x2, wqkv)                   # (B*S, 3*d_out)

    # Flash attention reads the fused layout directly (no splits/transposes)
    # and writes the merged-head context the out-projection consumes as-is.
    ctx = flash_attention_pallas(qkv, batch=B, seq=S, num_heads=num_heads,
                                 head_dim=head_dim, d_out=d_out)

    out = linear_pallas(ctx, wo, bo)                # out_proj (with bias)
    return out.reshape(B, S, d_out)


# --------------------------------------------------------------------------
# Demo / correctness check
# --------------------------------------------------------------------------

if __name__ == "__main__":
    key = jax.random.PRNGKey(0)
    batch, seq, d_in, d_out, num_heads = 2, 8, 32, 64, 4  # head_dim = 16

    kx, kq, kk, kv, ko, kb = jax.random.split(key, 6)
    x = jax.random.normal(kx, (batch, seq, d_in), jnp.float32)
    # Weights stored as (in, out) == torch nn.Linear .weight.T
    wq = jax.random.normal(kq, (d_in, d_out), jnp.float32) * 0.05
    wk = jax.random.normal(kk, (d_in, d_out), jnp.float32) * 0.05
    wv = jax.random.normal(kv, (d_in, d_out), jnp.float32) * 0.05
    wo = jax.random.normal(ko, (d_out, d_out), jnp.float32) * 0.05
    bo = jax.random.normal(kb, (d_out,), jnp.float32) * 0.05

    # Fuse the QKV weights once, outside the jitted forward.
    wqkv = jnp.concatenate([wq, wk, wv], axis=1)    # (d_in, 3*d_out)

    out = multi_head_attention(x, wqkv, wo, bo, num_heads=num_heads)
    jax.block_until_ready(out)

    # Pure-JAX reference of the same math (dropout = identity / eval mode).
    def ref_mha(x, wq, wk, wv, wo, bo, num_heads):
        B, S, _ = x.shape
        d_out = wq.shape[1]
        hd = d_out // num_heads
        q = (x @ wq).reshape(B, S, num_heads, hd).transpose(0, 2, 1, 3)
        k = (x @ wk).reshape(B, S, num_heads, hd).transpose(0, 2, 1, 3)
        v = (x @ wv).reshape(B, S, num_heads, hd).transpose(0, 2, 1, 3)
        s = jnp.einsum("bhqd,bhkd->bhqk", q, k) / math.sqrt(hd)
        mask = jnp.triu(jnp.ones((S, S), bool), k=1)
        s = jnp.where(mask[None, None], -jnp.inf, s)
        p = jax.nn.softmax(s, axis=-1)
        ctx = jnp.einsum("bhqk,bhkd->bhqd", p, v)
        ctx = ctx.transpose(0, 2, 1, 3).reshape(B, S, d_out)
        return ctx @ wo + bo

    ref = ref_mha(x, wq, wk, wv, wo, bo, num_heads)
    assert out.shape == ref.shape
    # Tolerance covers the approximate (EUP) reciprocal in the softmax finalize.
    assert jnp.allclose(out, ref, atol=2e-3, rtol=2e-3), "mismatch vs reference"

    print("KERNEL_OK")
</pallas_src>

<mosaic_0001>
module attributes {stable_mosaic.version = 11 : i64} {
  func.func @_linear_kernel(%arg0: i32, %arg1: i32, %arg2: i32, %arg3: memref<16x32xf32, #tpu.memory_space<vmem>>, %arg4: memref<32x192xf32, #tpu.memory_space<vmem>>, %arg5: memref<16x192xf32, #tpu.memory_space<vmem>>, %arg6: memref<16x192xf32, #tpu.memory_space<vmem>>) attributes {dimension_semantics = [#tpu.dimension_semantics<parallel>, #tpu.dimension_semantics<parallel>, #tpu.dimension_semantics<arbitrary>], iteration_bounds = array<i64: 1, 1, 1>, scalar_prefetch = 0 : i64, scratch_operands = 1 : i64, tpu.core_type = #tpu.core_type<tc>, window_params = [{transform_indices = @transform_0, window_bounds = array<i64: 16, 32>}, {transform_indices = @transform_1, window_bounds = array<i64: 32, 192>}, {transform_indices = @transform_2, window_bounds = array<i64: 16, 192>}]} {
    %c0_i32 = arith.constant 0 : i32
    %0 = arith.cmpi eq, %arg2, %c0_i32 : i32
    %1 = arith.extui %0 : i1 to i32
    %c0_i32_0 = arith.constant 0 : i32
    %2 = arith.cmpi ne, %1, %c0_i32_0 : i32
    scf.if %2 {
      %cst_10 = arith.constant 0.000000e+00 : f32
      %12 = vector.broadcast %cst_10 : f32 to vector<16x192xf32>
      %c0_11 = arith.constant 0 : index
      %c0_12 = arith.constant 0 : index
      %13 = vector.load %arg6[%c0_11, %c0_12] : memref<16x192xf32, #tpu.memory_space<vmem>>, vector<16x192xf32>
      tpu.vector_store %arg6[%c0_11, %c0_12], %12 {strides = array<i32>} : memref<16x192xf32, #tpu.memory_space<vmem>>, vector<16x192xf32>,
    } else {
    }
    %c0 = arith.constant 0 : index
    %c0_1 = arith.constant 0 : index
    %3 = vector.load %arg6[%c0, %c0_1] : memref<16x192xf32, #tpu.memory_space<vmem>>, vector<16x192xf32>
    %c0_2 = arith.constant 0 : index
    %c0_3 = arith.constant 0 : index
    %4 = vector.load %arg3[%c0_2, %c0_3] : memref<16x32xf32, #tpu.memory_space<vmem>>, vector<16x32xf32>
    %c0_4 = arith.constant 0 : index
    %c0_5 = arith.constant 0 : index
    %5 = vector.load %arg4[%c0_4, %c0_5] : memref<32x192xf32, #tpu.memory_space<vmem>>, vector<32x192xf32>
    %cst = arith.constant dense<0.000000e+00> : vector<16x192xf32>
    %6 = tpu.matmul %4, %5, %cst {dimension_numbers = #tpu.dot_dimension_numbers<[1], [0], [0], [1], [0, 0, 1, 1], [], []>} : vector<16x32xf32>, vector<32x192xf32>, vector<16x192xf32> -> vector<16x192xf32>
    %7 = arith.addf %3, %6 : vector<16x192xf32>
    %c0_6 = arith.constant 0 : index
    %c0_7 = arith.constant 0 : index
    %8 = vector.load %arg6[%c0_6, %c0_7] : memref<16x192xf32, #tpu.memory_space<vmem>>, vector<16x192xf32>
    tpu.vector_store %arg6[%c0_6, %c0_7], %7 {strides = array<i32>} : memref<16x192xf32, #tpu.memory_space<vmem>>, vector<16x192xf32>,
    %c0_i32_8 = arith.constant 0 : i32
    %9 = arith.cmpi eq, %arg2, %c0_i32_8 : i32
    %10 = arith.extui %9 : i1 to i32
    %c0_i32_9 = arith.constant 0 : i32
    %11 = arith.cmpi ne, %10, %c0_i32_9 : i32
    scf.if %11 {
      %c0_10 = arith.constant 0 : index
      %c0_11 = arith.constant 0 : index
      %12 = vector.load %arg6[%c0_10, %c0_11] : memref<16x192xf32, #tpu.memory_space<vmem>>, vector<16x192xf32>
      %c0_12 = arith.constant 0 : index
      %c0_13 = arith.constant 0 : index
      %13 = vector.load %arg5[%c0_12, %c0_13] : memref<16x192xf32, #tpu.memory_space<vmem>>, vector<16x192xf32>
      tpu.vector_store %arg5[%c0_12, %c0_13], %12 {strides = array<i32>} : memref<16x192xf32, #tpu.memory_space<vmem>>, vector<16x192xf32>,
    } else {
    }
    return
  }
  func.func @transform_0(%arg0: i32, %arg1: i32, %arg2: i32) -> (i32, i32) {
    %c0_i32 = arith.constant 0 : i32
    return %arg0, %arg2 : i32, i32
  }
  func.func @transform_1(%arg0: i32, %arg1: i32, %arg2: i32) -> (i32, i32) {
    %c0_i32 = arith.constant 0 : i32
    return %arg2, %arg1 : i32, i32
  }
  func.func @transform_2(%arg0: i32, %arg1: i32, %arg2: i32) -> (i32, i32) {
    %c0_i32 = arith.constant 0 : i32
    return %arg0, %arg1 : i32, i32
  }
}

module attributes {stable_mosaic.version = 11 : i64} {
  func.func @_linear_kernel(%arg0: i32, %arg1: i32, %arg2: i32, %arg3: memref<16x64xf32, #tpu.memory_space<vmem>>, %arg4: memref<64x64xf32, #tpu.memory_space<vmem>>, %arg5: memref<1x64xf32, #tpu.memory_space<vmem>>, %arg6: memref<16x64xf32, #tpu.memory_space<vmem>>, %arg7: memref<16x64xf32, #tpu.memory_space<vmem>>) attributes {dimension_semantics = [#tpu.dimension_semantics<parallel>, #tpu.dimension_semantics<parallel>, #tpu.dimension_semantics<arbitrary>], iteration_bounds = array<i64: 1, 1, 1>, scalar_prefetch = 0 : i64, scratch_operands = 1 : i64, tpu.core_type = #tpu.core_type<tc>, window_params = [{transform_indices = @transform_0, window_bounds = array<i64: 16, 64>}, {transform_indices = @transform_1, window_bounds = array<i64: 64, 64>}, {transform_indices = @transform_2, window_bounds = array<i64: 1, 64>}, {transform_indices = @transform_3, window_bounds = array<i64: 16, 64>}]} {
    %c0_i32 = arith.constant 0 : i32
    %0 = arith.cmpi eq, %arg2, %c0_i32 : i32
    %1 = arith.extui %0 : i1 to i32
    %c0_i32_0 = arith.constant 0 : i32
    %2 = arith.cmpi ne, %1, %c0_i32_0 : i32
    scf.if %2 {
      %cst_10 = arith.constant 0.000000e+00 : f32
      %12 = vector.broadcast %cst_10 : f32 to vector<16x64xf32>
      %c0_11 = arith.constant 0 : index
      %c0_12 = arith.constant 0 : index
      %13 = vector.load %arg7[%c0_11, %c0_12] : memref<16x64xf32, #tpu.memory_space<vmem>>, vector<16x64xf32>
      tpu.vector_store %arg7[%c0_11, %c0_12], %12 {strides = array<i32>} : memref<16x64xf32, #tpu.memory_space<vmem>>, vector<16x64xf32>,
    } else {
    }
    %c0 = arith.constant 0 : index
    %c0_1 = arith.constant 0 : index
    %3 = vector.load %arg7[%c0, %c0_1] : memref<16x64xf32, #tpu.memory_space<vmem>>, vector<16x64xf32>
    %c0_2 = arith.constant 0 : index
    %c0_3 = arith.constant 0 : index
    %4 = vector.load %arg3[%c0_2, %c0_3] : memref<16x64xf32, #tpu.memory_space<vmem>>, vector<16x64xf32>
    %c0_4 = arith.constant 0 : index
    %c0_5 = arith.constant 0 : index
    %5 = vector.load %arg4[%c0_4, %c0_5] : memref<64x64xf32, #tpu.memory_space<vmem>>, vector<64x64xf32>
    %cst = arith.constant dense<0.000000e+00> : vector<16x64xf32>
    %6 = tpu.matmul %4, %5, %cst {dimension_numbers = #tpu.dot_dimension_numbers<[1], [0], [0], [1], [0, 0, 1, 1], [], []>} : vector<16x64xf32>, vector<64x64xf32>, vector<16x64xf32> -> vector<16x64xf32>
    %7 = arith.addf %3, %6 : vector<16x64xf32>
    %c0_6 = arith.constant 0 : index
    %c0_7 = arith.constant 0 : index
    %8 = vector.load %arg7[%c0_6, %c0_7] : memref<16x64xf32, #tpu.memory_space<vmem>>, vector<16x64xf32>
    tpu.vector_store %arg7[%c0_6, %c0_7], %7 {strides = array<i32>} : memref<16x64xf32, #tpu.memory_space<vmem>>, vector<16x64xf32>,
    %c0_i32_8 = arith.constant 0 : i32
    %9 = arith.cmpi eq, %arg2, %c0_i32_8 : i32
    %10 = arith.extui %9 : i1 to i32
    %c0_i32_9 = arith.constant 0 : i32
    %11 = arith.cmpi ne, %10, %c0_i32_9 : i32
    scf.if %11 {
      %c0_10 = arith.constant 0 : index
      %c0_11 = arith.constant 0 : index
      %12 = vector.load %arg7[%c0_10, %c0_11] : memref<16x64xf32, #tpu.memory_space<vmem>>, vector<16x64xf32>
      %c0_12 = arith.constant 0 : index
      %c0_13 = arith.constant 0 : index
      %13 = vector.load %arg5[%c0_12, %c0_13] : memref<1x64xf32, #tpu.memory_space<vmem>>, vector<1x64xf32>
      %14 = vector.broadcast %13 : vector<1x64xf32> to vector<16x64xf32>
      %15 = arith.addf %12, %14 : vector<16x64xf32>
      %c0_14 = arith.constant 0 : index
      %c0_15 = arith.constant 0 : index
      %16 = vector.load %arg6[%c0_14, %c0_15] : memref<16x64xf32, #tpu.memory_space<vmem>>, vector<16x64xf32>
      tpu.vector_store %arg6[%c0_14, %c0_15], %15 {strides = array<i32>} : memref<16x64xf32, #tpu.memory_space<vmem>>, vector<16x64xf32>,
    } else {
    }
    return
  }
  func.func @transform_0(%arg0: i32, %arg1: i32, %arg2: i32) -> (i32, i32) {
    %c0_i32 = arith.constant 0 : i32
    return %arg0, %arg2 : i32, i32
  }
  func.func @transform_1(%arg0: i32, %arg1: i32, %arg2: i32) -> (i32, i32) {
    %c0_i32 = arith.constant 0 : i32
    return %arg2, %arg1 : i32, i32
  }
  func.func @transform_2(%arg0: i32, %arg1: i32, %arg2: i32) -> (i32, i32) {
    %c0_i32 = arith.constant 0 : i32
    %c0_i32_0 = arith.constant 0 : i32
    return %c0_i32, %arg1 : i32, i32
  }
  func.func @transform_3(%arg0: i32, %arg1: i32, %arg2: i32) -> (i32, i32) {
    %c0_i32 = arith.constant 0 : i32
    return %arg0, %arg1 : i32, i32
  }
}

module attributes {stable_mosaic.version = 11 : i64} {
  func.func @_flash_attn_kernel(%arg0: i32, %arg1: i32, %arg2: i32, %arg3: i32, %arg4: memref<8x192xf32, #tpu.memory_space<vmem>>, %arg5: memref<8x192xf32, #tpu.memory_space<vmem>>, %arg6: memref<8x192xf32, #tpu.memory_space<vmem>>, %arg7: memref<8x64xf32, #tpu.memory_space<vmem>>, %arg8: memref<4x8x1xf32, #tpu.memory_space<vmem>>, %arg9: memref<4x8x1xf32, #tpu.memory_space<vmem>>, %arg10: memref<4x8x16xf32, #tpu.memory_space<vmem>>) attributes {dimension_semantics = [#tpu.dimension_semantics<parallel>, #tpu.dimension_semantics<parallel>, #tpu.dimension_semantics<parallel>, #tpu.dimension_semantics<arbitrary>], iteration_bounds = array<i64: 2, 1, 1, 1>, scalar_prefetch = 0 : i64, scratch_operands = 3 : i64, tpu.core_type = #tpu.core_type<tc>, window_params = [{transform_indices = @transform_0, window_bounds = array<i64: 8, 192>}, {transform_indices = @transform_1, window_bounds = array<i64: 8, 192>}, {transform_indices = @transform_2, window_bounds = array<i64: 8, 192>}, {transform_indices = @transform_3, window_bounds = array<i64: 8, 64>}]} {
    %c0_i32 = arith.constant 0 : i32
    %0 = arith.cmpi eq, %arg3, %c0_i32 : i32
    %1 = arith.extui %0 : i1 to i32
    %c0_i32_0 = arith.constant 0 : i32
    %2 = arith.cmpi ne, %1, %c0_i32_0 : i32
    scf.if %2 {
      %cst = arith.constant -1.000000e+30 : f32
      %13 = vector.broadcast %cst : f32 to vector<4x8x1xf32>
      %c0 = arith.constant 0 : index
      %c0_6 = arith.constant 0 : index
      %c0_7 = arith.constant 0 : index
      %14 = vector.load %arg8[%c0, %c0_6, %c0_7] : memref<4x8x1xf32, #tpu.memory_space<vmem>>, vector<4x8x1xf32>
      tpu.vector_store %arg8[%c0, %c0_6, %c0_7], %13 {strides = array<i32>} : memref<4x8x1xf32, #tpu.memory_space<vmem>>, vector<4x8x1xf32>,
      %cst_8 = arith.constant 0.000000e+00 : f32
      %15 = vector.broadcast %cst_8 : f32 to vector<4x8x1xf32>
      %c0_9 = arith.constant 0 : index
      %c0_10 = arith.constant 0 : index
      %c0_11 = arith.constant 0 : index
      %16 = vector.load %arg9[%c0_9, %c0_10, %c0_11] : memref<4x8x1xf32, #tpu.memory_space<vmem>>, vector<4x8x1xf32>
      tpu.vector_store %arg9[%c0_9, %c0_10, %c0_11], %15 {strides = array<i32>} : memref<4x8x1xf32, #tpu.memory_space<vmem>>, vector<4x8x1xf32>,
      %cst_12 = arith.constant 0.000000e+00 : f32
      %17 = vector.broadcast %cst_12 : f32 to vector<4x8x16xf32>
      %c0_13 = arith.constant 0 : index
      %c0_14 = arith.constant 0 : index
      %c0_15 = arith.constant 0 : index
      %18 = vector.load %arg10[%c0_13, %c0_14, %c0_15] : memref<4x8x16xf32, #tpu.memory_space<vmem>>, vector<4x8x16xf32>
      tpu.vector_store %arg10[%c0_13, %c0_14, %c0_15], %17 {strides = array<i32>} : memref<4x8x16xf32, #tpu.memory_space<vmem>>, vector<4x8x16xf32>,
    } else {
    }
    %c8_i32 = arith.constant 8 : i32
    %3 = arith.muli %arg2, %c8_i32 : i32
    %c8_i32_1 = arith.constant 8 : i32
    %4 = arith.muli %arg3, %c8_i32_1 : i32
    %c8_i32_2 = arith.constant 8 : i32
    %5 = arith.addi %3, %c8_i32_2 : i32
    %c1_i32 = arith.constant 1 : i32
    %6 = arith.subi %5, %c1_i32 : i32
    %7 = arith.cmpi sle, %4, %6 : i32
    %8 = arith.extui %7 : i1 to i32
    %c0_i32_3 = arith.constant 0 : i32
    %9 = arith.cmpi ne, %8, %c0_i32_3 : i32
    scf.if %9 {
      %13 = tpu.iota {dimensions = array<i32: 0>} : vector<8x8xi32>
      %14 = vector.broadcast %3 : i32 to vector<8x8xi32>
      %15 = arith.addi %14, %13 : vector<8x8xi32>
      %16 = tpu.iota {dimensions = array<i32: 1>} : vector<8x8xi32>
      %17 = vector.broadcast %4 : i32 to vector<8x8xi32>
      %18 = arith.addi %17, %16 : vector<8x8xi32>
      %19 = arith.cmpi sle, %18, %15 : vector<8x8xi32>
      %c0 = arith.constant 0 : index
      %c0_6 = arith.constant 0 : index
      %20 = vector.load %arg4[%c0, %c0_6] : memref<8x192xf32, #tpu.memory_space<vmem>>, vector<8x16xf32>
      %cst = arith.constant 2.500000e-01 : f32
      %21 = vector.broadcast %cst : f32 to vector<8x16xf32>
      %22 = arith.mulf %20, %21 : vector<8x16xf32>
      %c0_7 = arith.constant 0 : index
      %c64 = arith.constant 64 : index
      %23 = vector.load %arg5[%c0_7, %c64] : memref<8x192xf32, #tpu.memory_space<vmem>>, vector<8x16xf32>
      %c0_8 = arith.constant 0 : index
      %c128 = arith.constant 128 : index
      %24 = vector.load %arg6[%c0_8, %c128] : memref<8x192xf32, #tpu.memory_space<vmem>>, vector<8x16xf32>
      %cst_9 = arith.constant dense<0.000000e+00> : vector<8x8xf32>
      %25 = tpu.matmul %22, %23, %cst_9 {dimension_numbers = #tpu.dot_dimension_numbers<[1], [1], [0], [0], [0, 0, 1, 0], [], []>} : vector<8x16xf32>, vector<8x16xf32>, vector<8x8xf32> -> vector<8x8xf32>
      %cst_10 = arith.constant -1.000000e+30 : f32
      %26 = vector.broadcast %cst_10 : f32 to vector<8x8xf32>
      %27 = arith.select %19, %25, %26 : vector<8x8xi1>, vector<8x8xf32>
      %c0_11 = arith.constant 0 : index
      %c0_12 = arith.constant 0 : index
      %c0_13 = arith.constant 0 : index
      %28 = vector.load %arg8[%c0_11, %c0_12, %c0_13] : memref<4x8x1xf32, #tpu.memory_space<vmem>>, vector<1x8x1xf32>
      %29 = vector.shape_cast %28 : vector<1x8x1xf32> to vector<8x1xf32>
      %cst_14 = arith.constant dense<0xFF800000> : vector<8xf32>
      %30 = vector.multi_reduction <maximumf>, %27, %cst_14 [1] : vector<8x8xf32> to vector<8xf32>
      %31 = vector.shape_cast %30 : vector<8xf32> to vector<8x1xf32>
      %32 = arith.maximumf %29, %31 : vector<8x1xf32>
      %33 = arith.subf %29, %32 : vector<8x1xf32>
      %34 = math.exp %33 : vector<8x1xf32>
      %35 = vector.broadcast %32 : vector<8x1xf32> to vector<8x8xf32>
      %36 = arith.subf %27, %35 : vector<8x8xf32>
      %37 = math.exp %36 : vector<8x8xf32>
      %c0_15 = arith.constant 0 : index
      %c0_16 = arith.constant 0 : index
      %c0_17 = arith.constant 0 : index
      %38 = vector.load %arg9[%c0_15, %c0_16, %c0_17] : memref<4x8x1xf32, #tpu.memory_space<vmem>>, vector<1x8x1xf32>
      %39 = vector.shape_cast %38 : vector<1x8x1xf32> to vector<8x1xf32>
      %40 = arith.mulf %34, %39 : vector<8x1xf32>
      %cst_18 = arith.constant dense<0.000000e+00> : vector<8xf32>
      %41 = vector.multi_reduction <add>, %37, %cst_18 [1] : vector<8x8xf32> to vector<8xf32>
      %42 = vector.shape_cast %41 : vector<8xf32> to vector<8x1xf32>
      %43 = arith.addf %40, %42 : vector<8x1xf32>
      %c0_19 = arith.constant 0 : index
      %c0_20 = arith.constant 0 : index
      %c0_21 = arith.constant 0 : index
      %44 = vector.load %arg9[%c0_19, %c0_20, %c0_21] : memref<4x8x1xf32, #tpu.memory_space<vmem>>, vector<1x8x1xf32>
      %45 = vector.shape_cast %44 : vector<1x8x1xf32> to vector<8x1xf32>
      %46 = vector.shape_cast %43 : vector<8x1xf32> to vector<1x8x1xf32>
      tpu.vector_store %arg9[%c0_19, %c0_20, %c0_21], %46 {strides = array<i32>} : memref<4x8x1xf32, #tpu.memory_space<vmem>>, vector<1x8x1xf32>,
      %c0_22 = arith.constant 0 : index
      %c0_23 = arith.constant 0 : index
      %c0_24 = arith.constant 0 : index
      %47 = vector.load %arg10[%c0_22, %c0_23, %c0_24] : memref<4x8x16xf32, #tpu.memory_space<vmem>>, vector<1x8x16xf32>
      %48 = vector.shape_cast %47 : vector<1x8x16xf32> to vector<8x16xf32>
      %49 = vector.broadcast %34 : vector<8x1xf32> to vector<8x16xf32>
      %50 = arith.mulf %49, %48 : vector<8x16xf32>
      %cst_25 = arith.constant dense<0.000000e+00> : vector<8x16xf32>
      %51 = tpu.matmul %37, %24, %cst_25 {dimension_numbers = #tpu.dot_dimension_numbers<[1], [0], [0], [1], [0, 0, 1, 1], [], []>} : vector<8x8xf32>, vector<8x16xf32>, vector<8x16xf32> -> vector<8x16xf32>
      %52 = arith.addf %50, %51 : vector<8x16xf32>
      %c0_26 = arith.constant 0 : index
      %c0_27 = arith.constant 0 : index
      %c0_28 = arith.constant 0 : index
      %53 = vector.load %arg10[%c0_26, %c0_27, %c0_28] : memref<4x8x16xf32, #tpu.memory_space<vmem>>, vector<1x8x16xf32>
      %54 = vector.shape_cast %53 : vector<1x8x16xf32> to vector<8x16xf32>
      %55 = vector.shape_cast %52 : vector<8x16xf32> to vector<1x8x16xf32>
      tpu.vector_store %arg10[%c0_26, %c0_27, %c0_28], %55 {strides = array<i32>} : memref<4x8x16xf32, #tpu.memory_space<vmem>>, vector<1x8x16xf32>,
      %c0_29 = arith.constant 0 : index
      %c0_30 = arith.constant 0 : index
      %c0_31 = arith.constant 0 : index
      %56 = vector.load %arg8[%c0_29, %c0_30, %c0_31] : memref<4x8x1xf32, #tpu.memory_space<vmem>>, vector<1x8x1xf32>
      %57 = vector.shape_cast %56 : vector<1x8x1xf32> to vector<8x1xf32>
      %58 = vector.shape_cast %32 : vector<8x1xf32> to vector<1x8x1xf32>
      tpu.vector_store %arg8[%c0_29, %c0_30, %c0_31], %58 {strides = array<i32>} : memref<4x8x1xf32, #tpu.memory_space<vmem>>, vector<1x8x1xf32>,
      %c0_32 = arith.constant 0 : index
      %c16 = arith.constant 16 : index
      %59 = vector.load %arg4[%c0_32, %c16] : memref<8x192xf32, #tpu.memory_space<vmem>>, vector<8x16xf32>
      %cst_33 = arith.constant 2.500000e-01 : f32
      %60 = vector.broadcast %cst_33 : f32 to vector<8x16xf32>
      %61 = arith.mulf %59, %60 : vector<8x16xf32>
      %c0_34 = arith.constant 0 : index
      %c80 = arith.constant 80 : index
      %62 = vector.load %arg5[%c0_34, %c80] : memref<8x192xf32, #tpu.memory_space<vmem>>, vector<8x16xf32>
      %c0_35 = arith.constant 0 : index
      %c144 = arith.constant 144 : index
      %63 = vector.load %arg6[%c0_35, %c144] : memref<8x192xf32, #tpu.memory_space<vmem>>, vector<8x16xf32>
      %cst_36 = arith.constant dense<0.000000e+00> : vector<8x8xf32>
      %64 = tpu.matmul %61, %62, %cst_36 {dimension_numbers = #tpu.dot_dimension_numbers<[1], [1], [0], [0], [0, 0, 1, 0], [], []>} : vector<8x16xf32>, vector<8x16xf32>, vector<8x8xf32> -> vector<8x8xf32>
      %cst_37 = arith.constant -1.000000e+30 : f32
      %65 = vector.broadcast %cst_37 : f32 to vector<8x8xf32>
      %66 = arith.select %19, %64, %65 : vector<8x8xi1>, vector<8x8xf32>
      %c1 = arith.constant 1 : index
      %c0_38 = arith.constant 0 : index
      %c0_39 = arith.constant 0 : index
      %67 = vector.load %arg8[%c1, %c0_38, %c0_39] : memref<4x8x1xf32, #tpu.memory_space<vmem>>, vector<1x8x1xf32>
      %68 = vector.shape_cast %67 : vector<1x8x1xf32> to vector<8x1xf32>
      %cst_40 = arith.constant dense<0xFF800000> : vector<8xf32>
      %69 = vector.multi_reduction <maximumf>, %66, %cst_40 [1] : vector<8x8xf32> to vector<8xf32>
      %70 = vector.shape_cast %69 : vector<8xf32> to vector<8x1xf32>
      %71 = arith.maximumf %68, %70 : vector<8x1xf32>
      %72 = arith.subf %68, %71 : vector<8x1xf32>
      %73 = math.exp %72 : vector<8x1xf32>
      %74 = vector.broadcast %71 : vector<8x1xf32> to vector<8x8xf32>
      %75 = arith.subf %66, %74 : vector<8x8xf32>
      %76 = math.exp %75 : vector<8x8xf32>
      %c1_41 = arith.constant 1 : index
      %c0_42 = arith.constant 0 : index
      %c0_43 = arith.constant 0 : index
      %77 = vector.load %arg9[%c1_41, %c0_42, %c0_43] : memref<4x8x1xf32, #tpu.memory_space<vmem>>, vector<1x8x1xf32>
      %78 = vector.shape_cast %77 : vector<1x8x1xf32> to vector<8x1xf32>
      %79 = arith.mulf %73, %78 : vector<8x1xf32>
      %cst_44 = arith.constant dense<0.000000e+00> : vector<8xf32>
      %80 = vector.multi_reduction <add>, %76, %cst_44 [1] : vector<8x8xf32> to vector<8xf32>
      %81 = vector.shape_cast %80 : vector<8xf32> to vector<8x1xf32>
      %82 = arith.addf %79, %81 : vector<8x1xf32>
      %c1_45 = arith.constant 1 : index
      %c0_46 = arith.constant 0 : index
      %c0_47 = arith.constant 0 : index
      %83 = vector.load %arg9[%c1_45, %c0_46, %c0_47] : memref<4x8x1xf32, #tpu.memory_space<vmem>>, vector<1x8x1xf32>
      %84 = vector.shape_cast %83 : vector<1x8x1xf32> to vector<8x1xf32>
      %85 = vector.shape_cast %82 : vector<8x1xf32> to vector<1x8x1xf32>
      tpu.vector_store %arg9[%c1_45, %c0_46, %c0_47], %85 {strides = array<i32>} : memref<4x8x1xf32, #tpu.memory_space<vmem>>, vector<1x8x1xf32>,
      %c1_48 = arith.constant 1 : index
      %c0_49 = arith.constant 0 : index
      %c0_50 = arith.constant 0 : index
      %86 = vector.load %arg10[%c1_48, %c0_49, %c0_50] : memref<4x8x16xf32, #tpu.memory_space<vmem>>, vector<1x8x16xf32>
      %87 = vector.shape_cast %86 : vector<1x8x16xf32> to vector<8x16xf32>
      %88 = vector.broadcast %73 : vector<8x1xf32> to vector<8x16xf32>
      %89 = arith.mulf %88, %87 : vector<8x16xf32>
      %cst_51 = arith.constant dense<0.000000e+00> : vector<8x16xf32>
      %90 = tpu.matmul %76, %63, %cst_51 {dimension_numbers = #tpu.dot_dimension_numbers<[1], [0], [0], [1], [0, 0, 1, 1], [], []>} : vector<8x8xf32>, vector<8x16xf32>, vector<8x16xf32> -> vector<8x16xf32>
      %91 = arith.addf %89, %90 : vector<8x16xf32>
      %c1_52 = arith.constant 1 : index
      %c0_53 = arith.constant 0 : index
      %c0_54 = arith.constant 0 : index
      %92 = vector.load %arg10[%c1_52, %c0_53, %c0_54] : memref<4x8x16xf32, #tpu.memory_space<vmem>>, vector<1x8x16xf32>
      %93 = vector.shape_cast %92 : vector<1x8x16xf32> to vector<8x16xf32>
      %94 = vector.shape_cast %91 : vector<8x16xf32> to vector<1x8x16xf32>
      tpu.vector_store %arg10[%c1_52, %c0_53, %c0_54], %94 {strides = array<i32>} : memref<4x8x16xf32, #tpu.memory_space<vmem>>, vector<1x8x16xf32>,
      %c1_55 = arith.constant 1 : index
      %c0_56 = arith.constant 0 : index
      %c0_57 = arith.constant 0 : index
      %95 = vector.load %arg8[%c1_55, %c0_56, %c0_57] : memref<4x8x1xf32, #tpu.memory_space<vmem>>, vector<1x8x1xf32>
      %96 = vector.shape_cast %95 : vector<1x8x1xf32> to vector<8x1xf32>
      %97 = vector.shape_cast %71 : vector<8x1xf32> to vector<1x8x1xf32>
      tpu.vector_store %arg8[%c1_55, %c0_56, %c0_57], %97 {strides = array<i32>} : memref<4x8x1xf32, #tpu.memory_space<vmem>>, vector<1x8x1xf32>,
      %c0_58 = arith.constant 0 : index
      %c32 = arith.constant 32 : index
      %98 = vector.load %arg4[%c0_58, %c32] : memref<8x192xf32, #tpu.memory_space<vmem>>, vector<8x16xf32>
      %cst_59 = arith.constant 2.500000e-01 : f32
      %99 = vector.broadcast %cst_59 : f32 to vector<8x16xf32>
      %100 = arith.mulf %98, %99 : vector<8x16xf32>
      %c0_60 = arith.constant 0 : index
      %c96 = arith.constant 96 : index
      %101 = vector.load %arg5[%c0_60, %c96] : memref<8x192xf32, #tpu.memory_space<vmem>>, vector<8x16xf32>
      %c0_61 = arith.constant 0 : index
      %c160 = arith.constant 160 : index
      %102 = vector.load %arg6[%c0_61, %c160] : memref<8x192xf32, #tpu.memory_space<vmem>>, vector<8x16xf32>
      %cst_62 = arith.constant dense<0.000000e+00> : vector<8x8xf32>
      %103 = tpu.matmul %100, %101, %cst_62 {dimension_numbers = #tpu.dot_dimension_numbers<[1], [1], [0], [0], [0, 0, 1, 0], [], []>} : vector<8x16xf32>, vector<8x16xf32>, vector<8x8xf32> -> vector<8x8xf32>
      %cst_63 = arith.constant -1.000000e+30 : f32
      %104 = vector.broadcast %cst_63 : f32 to vector<8x8xf32>
      %105 = arith.select %19, %103, %104 : vector<8x8xi1>, vector<8x8xf32>
      %c2 = arith.constant 2 : index
      %c0_64 = arith.constant 0 : index
      %c0_65 = arith.constant 0 : index
      %106 = vector.load %arg8[%c2, %c0_64, %c0_65] : memref<4x8x1xf32, #tpu.memory_space<vmem>>, vector<1x8x1xf32>
      %107 = vector.shape_cast %106 : vector<1x8x1xf32> to vector<8x1xf32>
      %cst_66 = arith.constant dense<0xFF800000> : vector<8xf32>
      %108 = vector.multi_reduction <maximumf>, %105, %cst_66 [1] : vector<8x8xf32> to vector<8xf32>
      %109 = vector.shape_cast %108 : vector<8xf32> to vector<8x1xf32>
      %110 = arith.maximumf %107, %109 : vector<8x1xf32>
      %111 = arith.subf %107, %110 : vector<8x1xf32>
      %112 = math.exp %111 : vector<8x1xf32>
      %113 = vector.broadcast %110 : vector<8x1xf32> to vector<8x8xf32>
      %114 = arith.subf %105, %113 : vector<8x8xf32>
      %115 = math.exp %114 : vector<8x8xf32>
      %c2_67 = arith.constant 2 : index
      %c0_68 = arith.constant 0 : index
      %c0_69 = arith.constant 0 : index
      %116 = vector.load %arg9[%c2_67, %c0_68, %c0_69] : memref<4x8x1xf32, #tpu.memory_space<vmem>>, vector<1x8x1xf32>
      %117 = vector.shape_cast %116 : vector<1x8x1xf32> to vector<8x1xf32>
      %118 = arith.mulf %112, %117 : vector<8x1xf32>
      %cst_70 = arith.constant dense<0.000000e+00> : vector<8xf32>
      %119 = vector.multi_reduction <add>, %115, %cst_70 [1] : vector<8x8xf32> to vector<8xf32>
      %120 = vector.shape_cast %119 : vector<8xf32> to vector<8x1xf32>
      %121 = arith.addf %118, %120 : vector<8x1xf32>
      %c2_71 = arith.constant 2 : index
      %c0_72 = arith.constant 0 : index
      %c0_73 = arith.constant 0 : index
      %122 = vector.load %arg9[%c2_71, %c0_72, %c0_73] : memref<4x8x1xf32, #tpu.memory_space<vmem>>, vector<1x8x1xf32>
      %123 = vector.shape_cast %122 : vector<1x8x1xf32> to vector<8x1xf32>
      %124 = vector.shape_cast %121 : vector<8x1xf32> to vector<1x8x1xf32>
      tpu.vector_store %arg9[%c2_71, %c0_72, %c0_73], %124 {strides = array<i32>} : memref<4x8x1xf32, #tpu.memory_space<vmem>>, vector<1x8x1xf32>,
      %c2_74 = arith.constant 2 : index
      %c0_75 = arith.constant 0 : index
      %c0_76 = arith.constant 0 : index
      %125 = vector.load %arg10[%c2_74, %c0_75, %c0_76] : memref<4x8x16xf32, #tpu.memory_space<vmem>>, vector<1x8x16xf32>
      %126 = vector.shape_cast %125 : vector<1x8x16xf32> to vector<8x16xf32>
      %127 = vector.broadcast %112 : vector<8x1xf32> to vector<8x16xf32>
      %128 = arith.mulf %127, %126 : vector<8x16xf32>
      %cst_77 = arith.constant dense<0.000000e+00> : vector<8x16xf32>
      %129 = tpu.matmul %115, %102, %cst_77 {dimension_numbers = #tpu.dot_dimension_numbers<[1], [0], [0], [1], [0, 0, 1, 1], [], []>} : vector<8x8xf32>, vector<8x16xf32>, vector<8x16xf32> -> vector<8x16xf32>
      %130 = arith.addf %128, %129 : vector<8x16xf32>
      %c2_78 = arith.constant 2 : index
      %c0_79 = arith.constant 0 : index
      %c0_80 = arith.constant 0 : index
      %131 = vector.load %arg10[%c2_78, %c0_79, %c0_80] : memref<4x8x16xf32, #tpu.memory_space<vmem>>, vector<1x8x16xf32>
      %132 = vector.shape_cast %131 : vector<1x8x16xf32> to vector<8x16xf32>
      %133 = vector.shape_cast %130 : vector<8x16xf32> to vector<1x8x16xf32>
      tpu.vector_store %arg10[%c2_78, %c0_79, %c0_80], %133 {strides = array<i32>} : memref<4x8x16xf32, #tpu.memory_space<vmem>>, vector<1x8x16xf32>,
      %c2_81 = arith.constant 2 : index
      %c0_82 = arith.constant 0 : index
      %c0_83 = arith.constant 0 : index
      %134 = vector.load %arg8[%c2_81, %c0_82, %c0_83] : memref<4x8x1xf32, #tpu.memory_space<vmem>>, vector<1x8x1xf32>
      %135 = vector.shape_cast %134 : vector<1x8x1xf32> to vector<8x1xf32>
      %136 = vector.shape_cast %110 : vector<8x1xf32> to vector<1x8x1xf32>
      tpu.vector_store %arg8[%c2_81, %c0_82, %c0_83], %136 {strides = array<i32>} : memref<4x8x1xf32, #tpu.memory_space<vmem>>, vector<1x8x1xf32>,
      %c0_84 = arith.constant 0 : index
      %c48 = arith.constant 48 : index
      %137 = vector.load %arg4[%c0_84, %c48] : memref<8x192xf32, #tpu.memory_space<vmem>>, vector<8x16xf32>
      %cst_85 = arith.constant 2.500000e-01 : f32
      %138 = vector.broadcast %cst_85 : f32 to vector<8x16xf32>
      %139 = arith.mulf %137, %138 : vector<8x16xf32>
      %c0_86 = arith.constant 0 : index
      %c112 = arith.constant 112 : index
      %140 = vector.load %arg5[%c0_86, %c112] : memref<8x192xf32, #tpu.memory_space<vmem>>, vector<8x16xf32>
      %c0_87 = arith.constant 0 : index
      %c176 = arith.constant 176 : index
      %141 = vector.load %arg6[%c0_87, %c176] : memref<8x192xf32, #tpu.memory_space<vmem>>, vector<8x16xf32>
      %cst_88 = arith.constant dense<0.000000e+00> : vector<8x8xf32>
      %142 = tpu.matmul %139, %140, %cst_88 {dimension_numbers = #tpu.dot_dimension_numbers<[1], [1], [0], [0], [0, 0, 1, 0], [], []>} : vector<8x16xf32>, vector<8x16xf32>, vector<8x8xf32> -> vector<8x8xf32>
      %cst_89 = arith.constant -1.000000e+30 : f32
      %143 = vector.broadcast %cst_89 : f32 to vector<8x8xf32>
      %144 = arith.select %19, %142, %143 : vector<8x8xi1>, vector<8x8xf32>
      %c3 = arith.constant 3 : index
      %c0_90 = arith.constant 0 : index
      %c0_91 = arith.constant 0 : index
      %145 = vector.load %arg8[%c3, %c0_90, %c0_91] : memref<4x8x1xf32, #tpu.memory_space<vmem>>, vector<1x8x1xf32>
      %146 = vector.shape_cast %145 : vector<1x8x1xf32> to vector<8x1xf32>
      %cst_92 = arith.constant dense<0xFF800000> : vector<8xf32>
      %147 = vector.multi_reduction <maximumf>, %144, %cst_92 [1] : vector<8x8xf32> to vector<8xf32>
      %148 = vector.shape_cast %147 : vector<8xf32> to vector<8x1xf32>
      %149 = arith.maximumf %146, %148 : vector<8x1xf32>
      %150 = arith.subf %146, %149 : vector<8x1xf32>
      %151 = math.exp %150 : vector<8x1xf32>
      %152 = vector.broadcast %149 : vector<8x1xf32> to vector<8x8xf32>
      %153 = arith.subf %144, %152 : vector<8x8xf32>
      %154 = math.exp %153 : vector<8x8xf32>
      %c3_93 = arith.constant 3 : index
      %c0_94 = arith.constant 0 : index
      %c0_95 = arith.constant 0 : index
      %155 = vector.load %arg9[%c3_93, %c0_94, %c0_95] : memref<4x8x1xf32, #tpu.memory_space<vmem>>, vector<1x8x1xf32>
      %156 = vector.shape_cast %155 : vector<1x8x1xf32> to vector<8x1xf32>
      %157 = arith.mulf %151, %156 : vector<8x1xf32>
      %cst_96 = arith.constant dense<0.000000e+00> : vector<8xf32>
      %158 = vector.multi_reduction <add>, %154, %cst_96 [1] : vector<8x8xf32> to vector<8xf32>
      %159 = vector.shape_cast %158 : vector<8xf32> to vector<8x1xf32>
      %160 = arith.addf %157, %159 : vector<8x1xf32>
      %c3_97 = arith.constant 3 : index
      %c0_98 = arith.constant 0 : index
      %c0_99 = arith.constant 0 : index
      %161 = vector.load %arg9[%c3_97, %c0_98, %c0_99] : memref<4x8x1xf32, #tpu.memory_space<vmem>>, vector<1x8x1xf32>
      %162 = vector.shape_cast %161 : vector<1x8x1xf32> to vector<8x1xf32>
      %163 = vector.shape_cast %160 : vector<8x1xf32> to vector<1x8x1xf32>
      tpu.vector_store %arg9[%c3_97, %c0_98, %c0_99], %163 {strides = array<i32>} : memref<4x8x1xf32, #tpu.memory_space<vmem>>, vector<1x8x1xf32>,
      %c3_100 = arith.constant 3 : index
      %c0_101 = arith.constant 0 : index
      %c0_102 = arith.constant 0 : index
      %164 = vector.load %arg10[%c3_100, %c0_101, %c0_102] : memref<4x8x16xf32, #tpu.memory_space<vmem>>, vector<1x8x16xf32>
      %165 = vector.shape_cast %164 : vector<1x8x16xf32> to vector<8x16xf32>
      %166 = vector.broadcast %151 : vector<8x1xf32> to vector<8x16xf32>
      %167 = arith.mulf %166, %165 : vector<8x16xf32>
      %cst_103 = arith.constant dense<0.000000e+00> : vector<8x16xf32>
      %168 = tpu.matmul %154, %141, %cst_103 {dimension_numbers = #tpu.dot_dimension_numbers<[1], [0], [0], [1], [0, 0, 1, 1], [], []>} : vector<8x8xf32>, vector<8x16xf32>, vector<8x16xf32> -> vector<8x16xf32>
      %169 = arith.addf %167, %168 : vector<8x16xf32>
      %c3_104 = arith.constant 3 : index
      %c0_105 = arith.constant 0 : index
      %c0_106 = arith.constant 0 : index
      %170 = vector.load %arg10[%c3_104, %c0_105, %c0_106] : memref<4x8x16xf32, #tpu.memory_space<vmem>>, vector<1x8x16xf32>
      %171 = vector.shape_cast %170 : vector<1x8x16xf32> to vector<8x16xf32>
      %172 = vector.shape_cast %169 : vector<8x16xf32> to vector<1x8x16xf32>
      tpu.vector_store %arg10[%c3_104, %c0_105, %c0_106], %172 {strides = array<i32>} : memref<4x8x16xf32, #tpu.memory_space<vmem>>, vector<1x8x16xf32>,
      %c3_107 = arith.constant 3 : index
      %c0_108 = arith.constant 0 : index
      %c0_109 = arith.constant 0 : index
      %173 = vector.load %arg8[%c3_107, %c0_108, %c0_109] : memref<4x8x1xf32, #tpu.memory_space<vmem>>, vector<1x8x1xf32>
      %174 = vector.shape_cast %173 : vector<1x8x1xf32> to vector<8x1xf32>
      %175 = vector.shape_cast %149 : vector<8x1xf32> to vector<1x8x1xf32>
      tpu.vector_store %arg8[%c3_107, %c0_108, %c0_109], %175 {strides = array<i32>} : memref<4x8x1xf32, #tpu.memory_space<vmem>>, vector<1x8x1xf32>,
    } else {
    }
    %c0_i32_4 = arith.constant 0 : i32
    %10 = arith.cmpi eq, %arg3, %c0_i32_4 : i32
    %11 = arith.extui %10 : i1 to i32
    %c0_i32_5 = arith.constant 0 : i32
    %12 = arith.cmpi ne, %11, %c0_i32_5 : i32
    scf.if %12 {
      %c0 = arith.constant 0 : index
      %c0_6 = arith.constant 0 : index
      %c0_7 = arith.constant 0 : index
      %13 = vector.load %arg9[%c0, %c0_6, %c0_7] : memref<4x8x1xf32, #tpu.memory_space<vmem>>, vector<1x8x1xf32>
      %14 = vector.shape_cast %13 : vector<1x8x1xf32> to vector<8x1xf32>
      %15 = tpu.reciprocal %14 {approx = true} : vector<8x1xf32> -> vector<8x1xf32>
      %c0_8 = arith.constant 0 : index
      %c0_9 = arith.constant 0 : index
      %c0_10 = arith.constant 0 : index
      %16 = vector.load %arg10[%c0_8, %c0_9, %c0_10] : memref<4x8x16xf32, #tpu.memory_space<vmem>>, vector<1x8x16xf32>
      %17 = vector.shape_cast %16 : vector<1x8x16xf32> to vector<8x16xf32>
      %18 = vector.broadcast %15 : vector<8x1xf32> to vector<8x16xf32>
      %19 = arith.mulf %17, %18 : vector<8x16xf32>
      %c0_11 = arith.constant 0 : index
      %c0_12 = arith.constant 0 : index
      %20 = vector.load %arg7[%c0_11, %c0_12] : memref<8x64xf32, #tpu.memory_space<vmem>>, vector<8x16xf32>
      tpu.vector_store %arg7[%c0_11, %c0_12], %19 {strides = array<i32>} : memref<8x64xf32, #tpu.memory_space<vmem>>, vector<8x16xf32>,
      %c1 = arith.constant 1 : index
      %c0_13 = arith.constant 0 : index
      %c0_14 = arith.constant 0 : index
      %21 = vector.load %arg9[%c1, %c0_13, %c0_14] : memref<4x8x1xf32, #tpu.memory_space<vmem>>, vector<1x8x1xf32>
      %22 = vector.shape_cast %21 : vector<1x8x1xf32> to vector<8x1xf32>
      %23 = tpu.reciprocal %22 {approx = true} : vector<8x1xf32> -> vector<8x1xf32>
      %c1_15 = arith.constant 1 : index
      %c0_16 = arith.constant 0 : index
      %c0_17 = arith.constant 0 : index
      %24 = vector.load %arg10[%c1_15, %c0_16, %c0_17] : memref<4x8x16xf32, #tpu.memory_space<vmem>>, vector<1x8x16xf32>
      %25 = vector.shape_cast %24 : vector<1x8x16xf32> to vector<8x16xf32>
      %26 = vector.broadcast %23 : vector<8x1xf32> to vector<8x16xf32>
      %27 = arith.mulf %25, %26 : vector<8x16xf32>
      %c0_18 = arith.constant 0 : index
      %c16 = arith.constant 16 : index
      %28 = vector.load %arg7[%c0_18, %c16] : memref<8x64xf32, #tpu.memory_space<vmem>>, vector<8x16xf32>
      tpu.vector_store %arg7[%c0_18, %c16], %27 {strides = array<i32>} : memref<8x64xf32, #tpu.memory_space<vmem>>, vector<8x16xf32>,
      %c2 = arith.constant 2 : index
      %c0_19 = arith.constant 0 : index
      %c0_20 = arith.constant 0 : index
      %29 = vector.load %arg9[%c2, %c0_19, %c0_20] : memref<4x8x1xf32, #tpu.memory_space<vmem>>, vector<1x8x1xf32>
      %30 = vector.shape_cast %29 : vector<1x8x1xf32> to vector<8x1xf32>
      %31 = tpu.reciprocal %30 {approx = true} : vector<8x1xf32> -> vector<8x1xf32>
      %c2_21 = arith.constant 2 : index
      %c0_22 = arith.constant 0 : index
      %c0_23 = arith.constant 0 : index
      %32 = vector.load %arg10[%c2_21, %c0_22, %c0_23] : memref<4x8x16xf32, #tpu.memory_space<vmem>>, vector<1x8x16xf32>
      %33 = vector.shape_cast %32 : vector<1x8x16xf32> to vector<8x16xf32>
      %34 = vector.broadcast %31 : vector<8x1xf32> to vector<8x16xf32>
      %35 = arith.mulf %33, %34 : vector<8x16xf32>
      %c0_24 = arith.constant 0 : index
      %c32 = arith.constant 32 : index
      %36 = vector.load %arg7[%c0_24, %c32] : memref<8x64xf32, #tpu.memory_space<vmem>>, vector<8x16xf32>
      tpu.vector_store %arg7[%c0_24, %c32], %35 {strides = array<i32>} : memref<8x64xf32, #tpu.memory_space<vmem>>, vector<8x16xf32>,
      %c3 = arith.constant 3 : index
      %c0_25 = arith.constant 0 : index
      %c0_26 = arith.constant 0 : index
      %37 = vector.load %arg9[%c3, %c0_25, %c0_26] : memref<4x8x1xf32, #tpu.memory_space<vmem>>, vector<1x8x1xf32>
      %38 = vector.shape_cast %37 : vector<1x8x1xf32> to vector<8x1xf32>
      %39 = tpu.reciprocal %38 {approx = true} : vector<8x1xf32> -> vector<8x1xf32>
      %c3_27 = arith.constant 3 : index
      %c0_28 = arith.constant 0 : index
      %c0_29 = arith.constant 0 : index
      %40 = vector.load %arg10[%c3_27, %c0_28, %c0_29] : memref<4x8x16xf32, #tpu.memory_space<vmem>>, vector<1x8x16xf32>
      %41 = vector.shape_cast %40 : vector<1x8x16xf32> to vector<8x16xf32>
      %42 = vector.broadcast %39 : vector<8x1xf32> to vector<8x16xf32>
      %43 = arith.mulf %41, %42 : vector<8x16xf32>
      %c0_30 = arith.constant 0 : index
      %c48 = arith.constant 48 : index
      %44 = vector.load %arg7[%c0_30, %c48] : memref<8x64xf32, #tpu.memory_space<vmem>>, vector<8x16xf32>
      tpu.vector_store %arg7[%c0_30, %c48], %43 {strides = array<i32>} : memref<8x64xf32, #tpu.memory_space<vmem>>, vector<8x16xf32>,
    } else {
    }
    return
  }
  func.func @transform_0(%arg0: i32, %arg1: i32, %arg2: i32, %arg3: i32) -> (i32, i32) {
    %c1_i32 = arith.constant 1 : i32
    %0 = arith.muli %arg0, %c1_i32 : i32
    %1 = arith.addi %0, %arg2 : i32
    %c0_i32 = arith.constant 0 : i32
    %2 = arith.addi %c0_i32, %arg1 : i32
    %c0_i32_0 = arith.constant 0 : i32
    return %1, %2 : i32, i32
  }
  func.func @transform_1(%arg0: i32, %arg1: i32, %arg2: i32, %arg3: i32) -> (i32, i32) {
    %c1_i32 = arith.constant 1 : i32
    %0 = arith.muli %arg0, %c1_i32 : i32
    %1 = arith.addi %0, %arg3 : i32
    %c0_i32 = arith.constant 0 : i32
    %2 = arith.addi %c0_i32, %arg1 : i32
    %c0_i32_0 = arith.constant 0 : i32
    return %1, %2 : i32, i32
  }
  func.func @transform_2(%arg0: i32, %arg1: i32, %arg2: i32, %arg3: i32) -> (i32, i32) {
    %c1_i32 = arith.constant 1 : i32
    %0 = arith.muli %arg0, %c1_i32 : i32
    %1 = arith.addi %0, %arg3 : i32
    %c0_i32 = arith.constant 0 : i32
    %2 = arith.addi %c0_i32, %arg1 : i32
    %c0_i32_0 = arith.constant 0 : i32
    return %1, %2 : i32, i32
  }
  func.func @transform_3(%arg0: i32, %arg1: i32, %arg2: i32, %arg3: i32) -> (i32, i32) {
    %c1_i32 = arith.constant 1 : i32
    %0 = arith.muli %arg0, %c1_i32 : i32
    %1 = arith.addi %0, %arg2 : i32
    %c0_i32 = arith.constant 0 : i32
    return %1, %arg1 : i32, i32
  }
}

</mosaic_0001>

<llo_original>
// kernel: multi_head_attention.5
$region0: #{multi_head_attention.5}
  #allocation0 [shape = 'u32[]', space=smem, size = 0x4, offset = 0x4, fixed_abs, tag = 'smem constant byte address 0x4 - core index']
  #allocation1 [shape = 'u32[144,128]{1,0:T(1,128)}', space=vmem, size = 0x12000, scoped, tag = 'internal scratch']
  #allocation2 [shape = 'f32[16,64]{1,0:T(8,128)}', space=vmem, size = 0x2000, scoped, tag = 'scratch operand']
  %s0 = inlined_call_operand.vmem [shape: f32[16,64], index: 0, kind: input, shape index: {}]
  %s1 = inlined_call_operand.vmem [shape: f32[64,64], index: 1, kind: input, shape index: {}]
  %s2 = inlined_call_operand.vmem [shape: f32[1,64], index: 2, kind: input, shape index: {}]
  %s3 = inlined_call_operand.hbm [shape: f32[16,64], index: 3, kind: output, shape index: {}]
  %s4 = sld [smem:[#allocation0]]
  $region30: #{multi_head_attention.5} parent=0
    _
  %s6 = ssub.s32 1, %s4
  %s7 = scalar_select 0, %s6, %s4
  $region1: #{multi_head_attention.5} parent=0
    #allocation3 [shape = 'u8[8192]{0}', space=vmem, size = 0x2000, scoped, tag = 'output window, operand 0, single buffered']
    #allocation4 [shape = 's32[1]{0}', space=sflag, size = 0x4, scoped, tag = 'scoped memory for multi_head_attention.5']
    %8 = vsyncpa [#allocation4], 0
    // Predicated region
    $region2: #{multi_head_attention.5} parent=1 // pred_check
      _
    $region3: #{multi_head_attention.5} parent=1 // pred_check_branch
      %10 = sbr.rel (0) target = $region5
    $region4: #{multi_head_attention.5} parent=1 // pred_region
      _
    $region5: #{multi_head_attention.5} parent=1 // pred_fallthru
      _
    // Predicated region
    $region6: #{multi_head_attention.5} parent=1 // pred_check
      _
    $region7: #{multi_head_attention.5} parent=1 // pred_check_branch
      %12 = sbr.rel (0) target = $region9
    $region8: #{multi_head_attention.5} parent=1 // pred_region
      _
    $region9: #{multi_head_attention.5} parent=1 // pred_fallthru
      _
    // Predicated region
    $region10: #{multi_head_attention.5} parent=1 // pred_check
      _
    $region11: #{multi_head_attention.5} parent=1 // pred_check_branch
      %14 = sbr.rel (0) target = $region13
    $region12: #{multi_head_attention.5} parent=1 // pred_region
      _
    $region13: #{multi_head_attention.5} parent=1 // pred_fallthru
      _
    %p15 = scmp.eq.s32.totalorder 0, 0
    // Predicated region
    $region14: #{multi_head_attention.5} parent=1 // pred_check
      %p16 = pneg %p15
    $region15: #{multi_head_attention.5} parent=1 // pred_check_branch
      %18 = sbr.rel (%p16) target = $region17
    $region16: #{multi_head_attention.5} parent=1 // pred_region
      %vm19 = vcmask 523264
      %20 = vst.msk [vmem:[#allocation2] sm:$0xff] %vm19, 0.0
      %21 = vst.msk [vmem:[#allocation2 + $0x8] sm:$0xff] %vm19, 0.0
    $region17: #{multi_head_attention.5} parent=1 // pred_fallthru
      _
    %v22 = vld [vmem:[#allocation2] sm:$0xff]
    %v23 = vld [vmem:[#allocation2 + $0x8] sm:$0xff]
    %v24 = vld [vmem:[%s0] sm:$0xff]
    %v25 = vld [vmem:[%s0 + $0x8] sm:$0xff]
    %v26 = vld [vmem:[%s1] sm:$0xff]
    %v27 = vld [vmem:[%s1 + $0x8] sm:$0xff]
    %v28 = vld [vmem:[%s1 + $0x10] sm:$0xff]
    %v29 = vld [vmem:[%s1 + $0x18] sm:$0xff]
    %v30 = vld [vmem:[%s1 + $0x20] sm:$0xff]
    %v31 = vld [vmem:[%s1 + $0x28] sm:$0xff]
    %v32 = vld [vmem:[%s1 + $0x30] sm:$0xff]
    %v33 = vld [vmem:[%s1 + $0x38] sm:$0xff]
    %vm34 = vcmask 523264
    %v36 = vsel %vm34, %v24, 0
    %v39 = vsel %vm34, %v25, 0
    %41 = vmatprep.subr.mxu0 0.0
    %42 = vmatpush1.msra.mxu0 %v26
    %43 = vmatprep.subr.mxu0 0.0
    %44 = vmatpush1.msra.mxu0 %v27
    %45 = vmatprep.subr.mxu0 0.0
    %46 = vmatpush1.msra.mxu0 %v28
    %47 = vmatprep.subr.mxu0 0.0
    %48 = vmatpush1.msra.mxu0 %v29
    %49 = vmatprep.subr.mxu0 0.0
    %50 = vmatpush1.msra.mxu0 %v30
    %51 = vmatprep.subr.mxu0 0.0
    %52 = vmatpush1.msra.mxu0 %v31
    %53 = vmatprep.subr.mxu0 0.0
    %54 = vmatpush1.msra.mxu0 %v32
    %55 = vmatprep.subr.mxu0 0.0
    %56 = vmatpush1.msra.mxu0 %v33
    %57 = vmatprep.subr.mxu0 0.0
    %58 = vmatpush1.msra.mxu0 0.0
    %59 = vmatprep.subr.mxu0 0.0
    %60 = vmatpush1.msra.mxu0 0.0
    %61 = vmatprep.subr.mxu0 0.0
    %62 = vmatpush1.msra.mxu0 0.0
    %63 = vmatprep.subr.mxu0 0.0
    %64 = vmatpush1.msra.mxu0 0.0
    %65 = vmatprep.subr.mxu0 0.0
    %66 = vmatpush1.msra.mxu0 0.0
    %67 = vmatprep.subr.mxu0 0.0
    %68 = vmatpush1.msra.mxu0 0.0
    %69 = vmatprep.subr.mxu0 0.0
    %70 = vmatpush1.msra.mxu0 0.0
    %71 = vmatprep.subr.mxu0 0.0
    %72 = vmatpush1.msra.mxu0 0.0
    %73 = vmatprep.subr.mxu0 0.0
    %74 = vmatpush1.msra.mxu0 0.0
    %75 = vmatprep.subr.mxu0 0.0
    %76 = vmatpush1.msra.mxu0 0.0
    %77 = vmatprep.subr.mxu0 0.0
    %78 = vmatpush1.msra.mxu0 0.0
    %79 = vmatprep.subr.mxu0 0.0
    %80 = vmatpush1.msra.mxu0 0.0
    %81 = vmatprep.subr.mxu0 0.0
    %82 = vmatpush1.msra.mxu0 0.0
    %83 = vmatprep.subr.mxu0 0.0
    %84 = vmatpush1.msra.mxu0 0.0
    %85 = vmatprep.subr.mxu0 0.0
    %86 = vmatpush1.msra.mxu0 0.0
    %87 = vmatprep.subr.mxu0 0.0
    %88 = vmatpush1.msra.mxu0 0.0
    %89 = vmatprep.subr.mxu0 0.0
    %90 = vmatpush1.msra.mxu0 0.0
    %91 = vmatprep.subr.mxu0 0.0
    %92 = vmatpush1.msra.mxu0 0.0
    %93 = vmatprep.subr.mxu0 0.0
    %94 = vmatpush1.msra.mxu0 0.0
    %95 = vmatprep.subr.mxu0 0.0
    %96 = vmatpush1.msra.mxu0 0.0
    %97 = vmatprep.subr.mxu0 0.0
    %98 = vmatpush1.msra.mxu0 0.0
    %99 = vmatprep.subr.mxu0 0.0
    %100 = vmatpush1.msra.mxu0 0.0
    %101 = vmatprep.subr.mxu0 0.0
    %102 = vmatpush1.msra.mxu0 0.0
    %103 = vmatprep.subr.mxu0 0.0
    %104 = vmatpush1.msra.mxu0 0.0
    %105 = vmatprep.mubr.f32.mxu0 0.0
    %106 = vmatmul.mubr.f32.gmra.mrb[0].mxu0 %v36
    %v107 = vpop.f32.mrb[0].mxu0
    %v108 = vadd.f32 0.0, %v107
    %v109 = vpop.f32.mrb[0].mxu0
    %110 = vmatprep.mubr.f32.mxu0 0.0
    %111 = vmatmul.mubr.f32.gmra.mrb[0].mxu0 %v39
    %v112 = vpop.f32.mrb[0].mxu0
    %v113 = vadd.f32 0.0, %v112
    %v114 = vpop.f32.mrb[0].mxu0
    %115 = vdwg.mxu0
    %v116 = vadd.f32 %v22, %v108
    %v117 = vadd.f32 %v23, %v113
    %118 = vst.msk [vmem:[#allocation2] sm:$0xff] %vm34, %v116
    %119 = vst.msk [vmem:[#allocation2 + $0x8] sm:$0xff] %vm34, %v117
    // Predicated region
    $region18: #{multi_head_attention.5} parent=1 // pred_check
      %p120 = pneg %p15
    $region19: #{multi_head_attention.5} parent=1 // pred_check_branch
      %122 = sbr.rel (%p120) target = $region21
    $region20: #{multi_head_attention.5} parent=1 // pred_region
      %v123 = vld [vmem:[#allocation2] sm:$0xff]
      %v124 = vld [vmem:[#allocation2 + $0x8] sm:$0xff]
      %v125 = vld [vmem:[%s2] sm:$0x1]
      %v127 = vlaneseq
      %v128 = vshrl.u32 %v127, 7
      %v129 = vsub.s32 0, %v128
      %v130 = vrot.slane %v125, %v129
      %v132 = vadd.f32 %v123, %v130
      %v133 = vadd.f32 %v124, %v130
      %134 = vst.msk [vmem:[#allocation3] sm:$0xff] %vm34, %v132
      %135 = vst.msk [vmem:[#allocation3 + $0x8] sm:$0xff] %vm34, %v133
    $region21: #{multi_head_attention.5} parent=1 // pred_fallthru
      _
    // Predicated region
    $region22: #{multi_head_attention.5} parent=1 // pred_check
      _
    $region23: #{multi_head_attention.5} parent=1 // pred_check_branch
      %137 = sbr.rel (0) target = $region25
    $region24: #{multi_head_attention.5} parent=1 // pred_region
      %s139 = ssub.s32 256, 256
      %140 = vsyncadd [#allocation4], %s139
      %s141 = sshll.u32 [#allocation3], 4
      %s142 = int_to_ptr.vmem [resolvable:$true] %s141
      %147 = dma.vmem_to_hbm [thread:$0]  %s142, 256, %s3, [#allocation4], 128, 128, 8
    $region25: #{multi_head_attention.5} parent=1 // pred_fallthru
      _
    // Predicated region
    $region26: #{multi_head_attention.5} parent=1 // pred_check
      _
    $region27: #{multi_head_attention.5} parent=1 // pred_check_branch
      %149 = sbr.rel (0) target = $region29
    $region28: #{multi_head_attention.5} parent=1 // pred_region
      %150 = dma.done [#allocation4], 256
    $region29: #{multi_head_attention.5} parent=1 // pred_fallthru
      _
    %151 = vsyncpa [#allocation4], 1

// kernel: multi_head_attention.3
$region0: #{multi_head_attention.3}
  #allocation0 [shape = 'u32[]', space=smem, size = 0x4, offset = 0x4, fixed_abs, tag = 'smem constant byte address 0x4 - core index']
  #allocation1 [shape = 'u32[144,128]{1,0:T(1,128)}', space=vmem, size = 0x12000, scoped, tag = 'internal scratch']
  #allocation2 [shape = 'f32[16,192]{1,0:T(8,128)}', space=vmem, size = 0x4000, scoped, tag = 'scratch operand']
  %s0 = inlined_call_operand.hbm [shape: f32[16,32], index: 0, kind: input, shape index: {}]
  %s1 = inlined_call_operand.hbm [shape: f32[32,192], index: 1, kind: input, shape index: {}]
  %s2 = inlined_call_operand.vmem [shape: f32[16,192], index: 2, kind: output, shape index: {}]
  %s3 = sld [smem:[#allocation0]]
  $region34: #{multi_head_attention.3} parent=0
    _
  %s5 = ssub.s32 1, %s3
  %s6 = scalar_select 0, %s5, %s3
  $region1: #{multi_head_attention.3} parent=0
    #allocation3 [shape = 'u8[8192]{0}', space=vmem, size = 0x2000, scoped, tag = 'input window, operand 0, single buffered']
    #allocation4 [shape = 's32[1]{0}', space=sflag, size = 0x4, scoped, tag = 'scoped memory for multi_head_attention.3']
    #allocation5 [shape = 'u8[32768]{0}', space=vmem, size = 0x8000, scoped, tag = 'input window, operand 1, single buffered']
    #allocation6 [shape = 's32[1]{0}', space=sflag, size = 0x4, scoped, tag = 'scoped memory for multi_head_attention.3']
    %7 = vsyncpa [#allocation4], 0
    %8 = vsyncpa [#allocation6], 0
    // Predicated region
    $region2: #{multi_head_attention.3} parent=1 // pred_check
      _
    $region3: #{multi_head_attention.3} parent=1 // pred_check_branch
      %10 = sbr.rel (0) target = $region5
    $region4: #{multi_head_attention.3} parent=1 // pred_region
      %s12 = ssub.s32 256, 256
      %13 = vsyncadd [#allocation4], %s12
      %s14 = sshll.u32 [#allocation3], 4
      %s15 = int_to_ptr.vmem [resolvable:$true] %s14
      %20 = dma.hbm_to_vmem [thread:$0]  %s0, 256, %s15, [#allocation4], 128, 128, 8
    $region5: #{multi_head_attention.3} parent=1 // pred_fallthru
      _
    // Predicated region
    $region6: #{multi_head_attention.3} parent=1 // pred_check
      _
    $region7: #{multi_head_attention.3} parent=1 // pred_check_branch
      %22 = sbr.rel (0) target = $region9
    $region8: #{multi_head_attention.3} parent=1 // pred_region
      %s24 = ssub.s32 1024, 1024
      %25 = vsyncadd [#allocation6], %s24
      %s26 = sshll.u32 [#allocation5], 4
      %s27 = int_to_ptr.vmem [resolvable:$true] %s26
      %32 = dma.hbm_to_vmem [thread:$0]  %s1, 1024, %s27, [#allocation6], 256, 256, 16
    $region9: #{multi_head_attention.3} parent=1 // pred_fallthru
      _
    // Predicated region
    $region10: #{multi_head_attention.3} parent=1 // pred_check
      _
    $region11: #{multi_head_attention.3} parent=1 // pred_check_branch
      %34 = sbr.rel (0) target = $region13
    $region12: #{multi_head_attention.3} parent=1 // pred_region
      %35 = dma.done [#allocation4], 256
    $region13: #{multi_head_attention.3} parent=1 // pred_fallthru
      _
    // Predicated region
    $region14: #{multi_head_attention.3} parent=1 // pred_check
      _
    $region15: #{multi_head_attention.3} parent=1 // pred_check_branch
      %37 = sbr.rel (0) target = $region17
    $region16: #{multi_head_attention.3} parent=1 // pred_region
      %38 = dma.done [#allocation6], 1024
    $region17: #{multi_head_attention.3} parent=1 // pred_fallthru
      _
    %p39 = scmp.eq.s32.totalorder 0, 0
    // Predicated region
    $region18: #{multi_head_attention.3} parent=1 // pred_check
      %p40 = pneg %p39
    $region19: #{multi_head_attention.3} parent=1 // pred_check_branch
      %42 = sbr.rel (%p40) target = $region21
    $region20: #{multi_head_attention.3} parent=1 // pred_region
      %43 = vst [vmem:[#allocation2] sm:$0xff] 0.0
      %vm44 = vcmask 523264
      %45 = vst.msk [vmem:[#allocation2 + $0x8] sm:$0xff] %vm44, 0.0
      %46 = vst [vmem:[#allocation2 + $0x10] sm:$0xff] 0.0
      %47 = vst.msk [vmem:[#allocation2 + $0x18] sm:$0xff] %vm44, 0.0
    $region21: #{multi_head_attention.3} parent=1 // pred_fallthru
      _
    %v48 = vld [vmem:[#allocation2] sm:$0xff]
    %v49 = vld [vmem:[#allocation2 + $0x8] sm:$0xff]
    %v50 = vld [vmem:[#allocation2 + $0x10] sm:$0xff]
    %v51 = vld [vmem:[#allocation2 + $0x18] sm:$0xff]
    %v52 = vld [vmem:[#allocation3] sm:$0xff]
    %v53 = vld [vmem:[#allocation3 + $0x8] sm:$0xff]
    %v54 = vld [vmem:[#allocation5] sm:$0xff]
    %v55 = vld [vmem:[#allocation5 + $0x8] sm:$0xff]
    %v56 = vld [vmem:[#allocation5 + $0x10] sm:$0xff]
    %v57 = vld [vmem:[#allocation5 + $0x18] sm:$0xff]
    %v58 = vld [vmem:[#allocation5 + $0x20] sm:$0xff]
    %v59 = vld [vmem:[#allocation5 + $0x28] sm:$0xff]
    %v60 = vld [vmem:[#allocation5 + $0x30] sm:$0xff]
    %v61 = vld [vmem:[#allocation5 + $0x38] sm:$0xff]
    %vm62 = vcmask 261120
    %v64 = vsel %vm62, %v52, 0
    %v67 = vsel %vm62, %v53, 0
    %69 = vmatprep.subr.mxu0 %v55
    %70 = vmatpush1.msra.mxu0 %v54
    %71 = vmatprep.subr.mxu0 %v57
    %72 = vmatpush1.msra.mxu0 %v56
    %73 = vmatprep.subr.mxu0 %v59
    %74 = vmatpush1.msra.mxu0 %v58
    %75 = vmatprep.subr.mxu0 %v61
    %76 = vmatpush1.msra.mxu0 %v60
    %77 = vmatprep.subr.mxu0 0.0
    %78 = vmatpush1.msra.mxu0 0.0
    %79 = vmatprep.subr.mxu0 0.0
    %80 = vmatpush1.msra.mxu0 0.0
    %81 = vmatprep.subr.mxu0 0.0
    %82 = vmatpush1.msra.mxu0 0.0
    %83 = vmatprep.subr.mxu0 0.0
    %84 = vmatpush1.msra.mxu0 0.0
    %85 = vmatprep.subr.mxu0 0.0
    %86 = vmatpush1.msra.mxu0 0.0
    %87 = vmatprep.subr.mxu0 0.0
    %88 = vmatpush1.msra.mxu0 0.0
    %89 = vmatprep.subr.mxu0 0.0
    %90 = vmatpush1.msra.mxu0 0.0
    %91 = vmatprep.subr.mxu0 0.0
    %92 = vmatpush1.msra.mxu0 0.0
    %93 = vmatprep.subr.mxu0 0.0
    %94 = vmatpush1.msra.mxu0 0.0
    %95 = vmatprep.subr.mxu0 0.0
    %96 = vmatpush1.msra.mxu0 0.0
    %97 = vmatprep.subr.mxu0 0.0
    %98 = vmatpush1.msra.mxu0 0.0
    %99 = vmatprep.subr.mxu0 0.0
    %100 = vmatpush1.msra.mxu0 0.0
    %101 = vmatprep.subr.mxu0 0.0
    %102 = vmatpush1.msra.mxu0 0.0
    %103 = vmatprep.subr.mxu0 0.0
    %104 = vmatpush1.msra.mxu0 0.0
    %105 = vmatprep.subr.mxu0 0.0
    %106 = vmatpush1.msra.mxu0 0.0
    %107 = vmatprep.subr.mxu0 0.0
    %108 = vmatpush1.msra.mxu0 0.0
    %109 = vmatprep.subr.mxu0 0.0
    %110 = vmatpush1.msra.mxu0 0.0
    %111 = vmatprep.subr.mxu0 0.0
    %112 = vmatpush1.msra.mxu0 0.0
    %113 = vmatprep.subr.mxu0 0.0
    %114 = vmatpush1.msra.mxu0 0.0
    %115 = vmatprep.subr.mxu0 0.0
    %116 = vmatpush1.msra.mxu0 0.0
    %117 = vmatprep.subr.mxu0 0.0
    %118 = vmatpush1.msra.mxu0 0.0
    %119 = vmatprep.subr.mxu0 0.0
    %120 = vmatpush1.msra.mxu0 0.0
    %121 = vmatprep.subr.mxu0 0.0
    %122 = vmatpush1.msra.mxu0 0.0
    %123 = vmatprep.subr.mxu0 0.0
    %124 = vmatpush1.msra.mxu0 0.0
    %125 = vmatprep.subr.mxu0 0.0
    %126 = vmatpush1.msra.mxu0 0.0
    %127 = vmatprep.subr.mxu0 0.0
    %128 = vmatpush1.msra.mxu0 0.0
    %129 = vmatprep.subr.mxu0 0.0
    %130 = vmatpush1.msra.mxu0 0.0
    %131 = vmatprep.subr.mxu0 0.0
    %132 = vmatpush1.msra.mxu0 0.0
    %133 = vmatprep.mubr.f32.mxu0 0.0
    %134 = vmatmul.mubr.f32.gmra.mrb[0].mxu0 %v64
    %v135 = vpop.f32.mrb[0].mxu0
    %v136 = vadd.f32 0.0, %v135
    %v137 = vpop.f32.mrb[0].mxu0
    %v138 = vadd.f32 0.0, %v137
    %139 = vmatprep.mubr.f32.mxu0 0.0
    %140 = vmatmul.mubr.f32.gmra.mrb[0].mxu0 %v67
    %v141 = vpop.f32.mrb[0].mxu0
    %v142 = vadd.f32 0.0, %v141
    %v143 = vpop.f32.mrb[0].mxu0
    %v144 = vadd.f32 0.0, %v143
    %145 = vdwg.mxu0
    %v146 = vadd.f32 %v48, %v136
    %v147 = vadd.f32 %v49, %v138
    %v148 = vadd.f32 %v50, %v142
    %v149 = vadd.f32 %v51, %v144
    %150 = vst [vmem:[#allocation2] sm:$0xff] %v146
    %vm151 = vcmask 523264
    %152 = vst.msk [vmem:[#allocation2 + $0x8] sm:$0xff] %vm151, %v147
    %153 = vst [vmem:[#allocation2 + $0x10] sm:$0xff] %v148
    %154 = vst.msk [vmem:[#allocation2 + $0x18] sm:$0xff] %vm151, %v149
    // Predicated region
    $region22: #{multi_head_attention.3} parent=1 // pred_check
      %p155 = pneg %p39
    $region23: #{multi_head_attention.3} parent=1 // pred_check_branch
      %157 = sbr.rel (%p155) target = $region25
    $region24: #{multi_head_attention.3} parent=1 // pred_region
      %v158 = vld [vmem:[#allocation2] sm:$0xff]
      %v159 = vld [vmem:[#allocation2 + $0x8] sm:$0xff]
      %v160 = vld [vmem:[#allocation2 + $0x10] sm:$0xff]
      %v161 = vld [vmem:[#allocation2 + $0x18] sm:$0xff]
      %162 = vst [vmem:[%s2] sm:$0xff] %v158
      %163 = vst.msk [vmem:[%s2 + $0x8] sm:$0xff] %vm151, %v159
      %164 = vst [vmem:[%s2 + $0x10] sm:$0xff] %v160
      %165 = vst.msk [vmem:[%s2 + $0x18] sm:$0xff] %vm151, %v161
    $region25: #{multi_head_attention.3} parent=1 // pred_fallthru
      _
    // Predicated region
    $region26: #{multi_head_attention.3} parent=1 // pred_check
      _
    $region27: #{multi_head_attention.3} parent=1 // pred_check_branch
      %167 = sbr.rel (0) target = $region29
    $region28: #{multi_head_attention.3} parent=1 // pred_region
      _
    $region29: #{multi_head_attention.3} parent=1 // pred_fallthru
      _
    // Predicated region
    $region30: #{multi_head_attention.3} parent=1 // pred_check
      _
    $region31: #{multi_head_attention.3} parent=1 // pred_check_branch
      %169 = sbr.rel (0) target = $region33
    $region32: #{multi_head_attention.3} parent=1 // pred_region
      _
    $region33: #{multi_head_attention.3} parent=1 // pred_fallthru
      _
    %170 = vsyncpa [#allocation4], 1
    %171 = vsyncpa [#allocation6], 1

// kernel: multi_head_attention.4
$region0: #{multi_head_attention.4}
  #allocation0 [shape = 'u32[]', space=smem, size = 0x4, offset = 0x4, fixed_abs, tag = 'smem constant byte address 0x4 - core index']
  #allocation1 [shape = 'u32[144,128]{1,0:T(1,128)}', space=vmem, size = 0x12000, scoped, tag = 'internal scratch']
  #allocation2 [shape = 'f32[4,8,1]{2,1,0:T(8,128)}', space=vmem, size = 0x4000, scoped, tag = 'scratch operand']
  #allocation3 [shape = 'f32[4,8,1]{2,1,0:T(8,128)}', space=vmem, size = 0x4000, scoped, tag = 'scratch operand']
  #allocation4 [shape = 'f32[4,8,16]{2,1,0:T(8,128)}', space=vmem, size = 0x4000, scoped, tag = 'scratch operand']
  %s0 = inlined_call_operand.vmem [shape: f32[16,192], index: 0, kind: input, shape index: {}, may-alias: {0,1,2}]
  %s1 = inlined_call_operand.vmem [shape: f32[16,192], index: 1, kind: input, shape index: {}, may-alias: {0,1,2}]
  %s2 = inlined_call_operand.vmem [shape: f32[16,192], index: 2, kind: input, shape index: {}, may-alias: {0,1,2}]
  %s3 = inlined_call_operand.vmem [shape: f32[16,64], index: 3, kind: output, shape index: {}]
  %s4 = sld [smem:[#allocation0]]
  $region57: #{multi_head_attention.4} parent=0
    _
  %s6 = ssub.s32 1, %s4
  %s7 = scalar_select 0, %s6, %s4
  loop: start=0, step=1, limit=4
  $region2: #{multi_head_attention.4} parent=0 // loop_pre_header
    _
  $region3: #{multi_head_attention.4} parent=0 // loop_header
    %s9 = sphi 0, %s13
    %p10 = scmp.ge.s32.totalorder %s9, 4
    %s16 = sphi 0, %s42
    %s17 = sphi 0, %s38
    %s18 = sphi 0, %s34
    %s19 = sphi 0, %s30
    %s20 = sphi 0, %s16
    %s21 = sphi 0, %s17
    %s22 = sphi 0, %s18
    %s23 = sphi 0, %s19
    %s24 = sphi 0, %s20
    %s25 = sphi 0, %s21
    %s26 = sphi 0, %s22
    %s27 = sphi 0, %s23
    %s49 = sphi 0, %s51
    %s52 = sphi 0, %s49
    %s53 = sphi 0, %s52
    %s69 = sphi 0, %s53
    %s79 = sphi 0, %s81
    %s82 = sphi 0, %s79
    %s83 = sphi 0, %s82
    %s99 = sphi 0, %s83
    %s109 = sphi 0, %s111
    %s112 = sphi 0, %s109
    %s113 = sphi 0, %s112
    %s129 = sphi 0, %s113
    %s139 = sphi 0, %s141
    %s142 = sphi 0, %s139
    %s143 = sphi 0, %s142
    %s159 = sphi 0, %s143
  $region4: #{multi_head_attention.4} parent=0 // loop_header_branch
    %12 = sbr.rel (%p10) target = $region8
  $region5: #{multi_head_attention.4} parent=0 // loop_body
    %s14 = ssub.s32 %s9, 1
    %s15 = ssub.s32 %s9, 2
    %s28 = sadd.s32 1, %s19
    %p29 = scmp.ge.s32.totalorder %s28, 1
    %s30 = scalar_select %p29, 0, %s28
    %s31 = sadd.s32 1, %s18
    %s32 = scalar_select %p29, %s31, %s18
    %p33 = scmp.ge.s32.totalorder %s32, 1
    %s34 = scalar_select %p33, 0, %s32
    %s35 = sadd.s32 1, %s17
    %s36 = scalar_select %p33, %s35, %s17
    %p37 = scmp.ge.s32.totalorder %s36, 1
    %s38 = scalar_select %p37, 0, %s36
    %s39 = sadd.s32 1, %s16
    %s40 = scalar_select %p37, %s39, %s16
    %p41 = scmp.ge.s32.totalorder %s40, 2
    %s42 = scalar_select %p41, 0, %s40
    %s43 = sadd.s32 %s16, %s18
    %s44 = sadd.s32 %s42, %s34
    %s45 = ssub.s32 %s43, %s44
    %s46 = ssub.s32 %s17, %s38
    %s47 = sor.u32 %s45, %s46
    %p48 = scmp.eq.s32.totalorder %s47, 0
    %s50 = sadd.s32 %s49, 1
    %s51 = scalar_select %p48, %s49, %s50
    %p54 = pneg %p48
    %p55 = scmp.eq.s32.totalorder %s9, 1
    %p56 = por %p54, %p55
    %p57 = scmp.ne.s32.totalorder %s49, %s52
    %p58 = scmp.eq.s32.totalorder %s9, 0
    %p59 = por %p57, %p58
    %p60 = scmp.ne.s32.totalorder %s49, %s52
    %p61 = scmp.eq.s32.totalorder %s14, 1
    %p62 = por %p60, %p61
    %p63 = scmp.ne.s32.totalorder %s52, %s53
    %p64 = scmp.eq.s32.totalorder %s14, 0
    %p65 = por %p63, %p64
    %p66 = scmp.ne.s32.totalorder %s52, %s53
    %p67 = scmp.eq.s32.totalorder %s15, 1
    %p68 = por %p66, %p67
    %p70 = scmp.ne.s32.totalorder %s53, %s69
    %p71 = scmp.eq.s32.totalorder %s15, 0
    %p72 = por %p70, %p71
    %s73 = sadd.s32 %s16, %s19
    %s74 = sadd.s32 %s42, %s30
    %s75 = ssub.s32 %s73, %s74
    %s76 = ssub.s32 %s17, %s38
    %s77 = sor.u32 %s75, %s76
    %p78 = scmp.eq.s32.totalorder %s77, 0
    %s80 = sadd.s32 %s79, 1
    %s81 = scalar_select %p78, %s79, %s80
    %p84 = pneg %p78
    %p85 = scmp.eq.s32.totalorder %s9, 1
    %p86 = por %p84, %p85
    %p87 = scmp.ne.s32.totalorder %s79, %s82
    %p88 = scmp.eq.s32.totalorder %s9, 0
    %p89 = por %p87, %p88
    %p90 = scmp.ne.s32.totalorder %s79, %s82
    %p91 = scmp.eq.s32.totalorder %s14, 1
    %p92 = por %p90, %p91
    %p93 = scmp.ne.s32.totalorder %s82, %s83
    %p94 = scmp.eq.s32.totalorder %s14, 0
    %p95 = por %p93, %p94
    %p96 = scmp.ne.s32.totalorder %s82, %s83
    %p97 = scmp.eq.s32.totalorder %s15, 1
    %p98 = por %p96, %p97
    %p100 = scmp.ne.s32.totalorder %s83, %s99
    %p101 = scmp.eq.s32.totalorder %s15, 0
    %p102 = por %p100, %p101
    %s103 = sadd.s32 %s16, %s19
    %s104 = sadd.s32 %s42, %s30
    %s105 = ssub.s32 %s103, %s104
    %s106 = ssub.s32 %s17, %s38
    %s107 = sor.u32 %s105, %s106
    %p108 = scmp.eq.s32.totalorder %s107, 0
    %s110 = sadd.s32 %s109, 1
    %s111 = scalar_select %p108, %s109, %s110
    %p114 = pneg %p108
    %p115 = scmp.eq.s32.totalorder %s9, 1
    %p116 = por %p114, %p115
    %p117 = scmp.ne.s32.totalorder %s109, %s112
    %p118 = scmp.eq.s32.totalorder %s9, 0
    %p119 = por %p117, %p118
    %p120 = scmp.ne.s32.totalorder %s109, %s112
    %p121 = scmp.eq.s32.totalorder %s14, 1
    %p122 = por %p120, %p121
    %p123 = scmp.ne.s32.totalorder %s112, %s113
    %p124 = scmp.eq.s32.totalorder %s14, 0
    %p125 = por %p123, %p124
    %p126 = scmp.ne.s32.totalorder %s112, %s113
    %p127 = scmp.eq.s32.totalorder %s15, 1
    %p128 = por %p126, %p127
    %p130 = scmp.ne.s32.totalorder %s113, %s129
    %p131 = scmp.eq.s32.totalorder %s15, 0
    %p132 = por %p130, %p131
    %s133 = sadd.s32 %s16, %s18
    %s134 = sadd.s32 %s42, %s34
    %s135 = ssub.s32 %s133, %s134
    %s136 = ssub.s32 %s17, %s38
    %s137 = sor.u32 %s135, %s136
    %p138 = scmp.eq.s32.totalorder %s137, 0
    %s140 = sadd.s32 %s139, 1
    %s141 = scalar_select %p138, %s139, %s140
    %p144 = pneg %p138
    %p145 = scmp.eq.s32.totalorder %s9, 1
    %p146 = por %p144, %p145
    %p147 = scmp.ne.s32.totalorder %s139, %s142
    %p148 = scmp.eq.s32.totalorder %s9, 0
    %p149 = por %p147, %p148
    %p150 = scmp.ne.s32.totalorder %s139, %s142
    %p151 = scmp.eq.s32.totalorder %s14, 1
    %p152 = por %p150, %p151
    %p153 = scmp.ne.s32.totalorder %s142, %s143
    %p154 = scmp.eq.s32.totalorder %s14, 0
    %p155 = por %p153, %p154
    %p156 = scmp.ne.s32.totalorder %s142, %s143
    %p157 = scmp.eq.s32.totalorder %s15, 1
    %p158 = por %p156, %p157
    %p160 = scmp.ne.s32.totalorder %s143, %s159
    %p161 = scmp.eq.s32.totalorder %s15, 0
    %p162 = por %p160, %p161
    %p163 = scmp.le.s32.totalorder 1, %s9
    %p164 = scmp.lt.s32.totalorder %s9, 3
    %p165 = pnand %p163, %p164
    %p166 = pneg %p165
    // Predicated region
    $region9: #{multi_head_attention.4} parent=5 // pred_check
      _
    $region10: #{multi_head_attention.4} parent=5 // pred_check_branch
      %168 = sbr.rel (%p165) target = $region12
    $region11: #{multi_head_attention.4} parent=5 // pred_region
      %s169 = ssub.s32 %s9, 1
    $region12: #{multi_head_attention.4} parent=5 // pred_fallthru
      _
    %p170 = scmp.lt.s32.totalorder %s9, 2
    // Predicated region
    $region13: #{multi_head_attention.4} parent=5 // pred_check
      %p171 = pneg %p170
    $region14: #{multi_head_attention.4} parent=5 // pred_check_branch
      %173 = sbr.rel (%p171) target = $region16
    $region15: #{multi_head_attention.4} parent=5 // pred_region
      // Predicated region
      $region17: #{multi_head_attention.4} parent=15 // pred_check
        %p174 = pneg %p59
      $region18: #{multi_head_attention.4} parent=15 // pred_check_branch
        %176 = sbr.rel (%p174) target = $region20
      $region19: #{multi_head_attention.4} parent=15 // pred_region
        %s177 = sadd.s32 %s16, %s18
        %s178 = smul.u32 2, %s17
        %p179 = scmp.lt.s32.totalorder %s177, 1
        %s180 = scalar_select %p179, %s177, 1
        %p181 = scmp.lt.s32.totalorder %s178, 1
        %s182 = scalar_select %p181, %s178, 1
        %s183 = smul.addr %s180, 2
        %s184 = sadd.s32 %s182, %s183
        %s185 = smul.addr %s184, 8
        %s186 = scalar_lea.vmem %s0, %s185
        %s187 = sadd.s32 %s16, %s18
        %s188 = smul.u32 2, %s17
      $region20: #{multi_head_attention.4} parent=15 // pred_fallthru
        _
      // Predicated region
      $region21: #{multi_head_attention.4} parent=15 // pred_check
        %p189 = pneg %p89
      $region22: #{multi_head_attention.4} parent=15 // pred_check_branch
        %191 = sbr.rel (%p189) target = $region24
      $region23: #{multi_head_attention.4} parent=15 // pred_region
        %s192 = sadd.s32 %s16, %s19
        %s193 = smul.u32 2, %s17
        %p194 = scmp.lt.s32.totalorder %s192, 1
        %s195 = scalar_select %p194, %s192, 1
        %p196 = scmp.lt.s32.totalorder %s193, 1
        %s197 = scalar_select %p196, %s193, 1
        %s198 = smul.addr %s195, 2
        %s199 = sadd.s32 %s197, %s198
        %s200 = smul.addr %s199, 8
        %s201 = scalar_lea.vmem %s1, %s200
        %s202 = sadd.s32 %s16, %s19
        %s203 = smul.u32 2, %s17
      $region24: #{multi_head_attention.4} parent=15 // pred_fallthru
        _
      // Predicated region
      $region25: #{multi_head_attention.4} parent=15 // pred_check
        %p204 = pneg %p119
      $region26: #{multi_head_attention.4} parent=15 // pred_check_branch
        %206 = sbr.rel (%p204) target = $region28
      $region27: #{multi_head_attention.4} parent=15 // pred_region
        %s207 = sadd.s32 %s16, %s19
        %s208 = smul.u32 2, %s17
        %p209 = scmp.lt.s32.totalorder %s207, 1
        %s210 = scalar_select %p209, %s207, 1
        %p211 = scmp.lt.s32.totalorder %s208, 1
        %s212 = scalar_select %p211, %s208, 1
        %s213 = smul.addr %s210, 2
        %s214 = sadd.s32 %s212, %s213
        %s215 = smul.addr %s214, 8
        %s216 = scalar_lea.vmem %s2, %s215
        %s217 = sadd.s32 %s16, %s19
        %s218 = smul.u32 2, %s17
      $region28: #{multi_head_attention.4} parent=15 // pred_fallthru
        _
    $region16: #{multi_head_attention.4} parent=5 // pred_fallthru
      _
    %p219 = scmp.le.s32.totalorder 1, %s9
    %p220 = scmp.lt.s32.totalorder %s9, 3
    %p221 = pnand %p219, %p220
    %p222 = pneg %p221
    // Predicated region
    $region29: #{multi_head_attention.4} parent=5 // pred_check
      _
    $region30: #{multi_head_attention.4} parent=5 // pred_check_branch
      %224 = sbr.rel (%p221) target = $region32
    $region31: #{multi_head_attention.4} parent=5 // pred_region
      %s225 = ssub.s32 %s9, 1
      %s226 = sadd.s32 %s20, %s22
      %s227 = smul.u32 2, %s21
      %p228 = scmp.lt.s32.totalorder %s226, 1
      %s229 = scalar_select %p228, %s226, 1
      %p230 = scmp.lt.s32.totalorder %s227, 1
      %s231 = scalar_select %p230, %s227, 1
      %s232 = smul.addr %s229, 2
      %s233 = sadd.s32 %s231, %s232
      %s234 = smul.addr %s233, 8
      %s235 = scalar_lea.vmem %s0, %s234
      %p236 = pneg %p65
      %p237 = pneg %p62
      %s238 = sadd.s32 %s20, %s23
      %s239 = smul.u32 2, %s21
      %p240 = scmp.lt.s32.totalorder %s238, 1
      %s241 = scalar_select %p240, %s238, 1
      %p242 = scmp.lt.s32.totalorder %s239, 1
      %s243 = scalar_select %p242, %s239, 1
      %s244 = smul.addr %s241, 2
      %s245 = sadd.s32 %s243, %s244
      %s246 = smul.addr %s245, 8
      %s247 = scalar_lea.vmem %s1, %s246
      %p248 = pneg %p95
      %p249 = pneg %p92
      %s250 = sadd.s32 %s20, %s23
      %s251 = smul.u32 2, %s21
      %p252 = scmp.lt.s32.totalorder %s250, 1
      %s253 = scalar_select %p252, %s250, 1
      %p254 = scmp.lt.s32.totalorder %s251, 1
      %s255 = scalar_select %p254, %s251, 1
      %s256 = smul.addr %s253, 2
      %s257 = sadd.s32 %s255, %s256
      %s258 = smul.addr %s257, 8
      %s259 = scalar_lea.vmem %s2, %s258
      %p260 = pneg %p125
      %p261 = pneg %p122
      %p262 = pneg %p155
      %p263 = pneg %p152
      %s264 = sadd.s32 %s20, %s22
      %p265 = scmp.lt.s32.totalorder %s264, 1
      %s266 = scalar_select %p265, %s264, 1
      %p267 = scmp.lt.s32.totalorder %s21, 0
      %s268 = scalar_select %p267, %s21, 0
      %s269 = sadd.s32 %s268, %s266
      %s270 = smul.addr %s269, 8
      %s271 = scalar_lea.vmem %s3, %s270
      %s272 = sadd.s32 %s20, %s22
      %s273 = smul.u32 2, %s21
      %p274 = scmp.lt.s32.totalorder %s272, 1
      %s275 = scalar_select %p274, %s272, 1
      %p276 = scmp.lt.s32.totalorder %s273, 1
      %s277 = scalar_select %p276, %s273, 1
      %s278 = smul.addr %s275, 2
      %s279 = sadd.s32 %s277, %s278
      %s280 = smul.addr %s279, 8
      %s281 = scalar_lea.vmem %s0, %s280
      %s282 = sadd.s32 %s20, %s22
      %s283 = smul.u32 2, %s21
      %s284 = sadd.s32 %s20, %s23
      %s285 = smul.u32 2, %s21
      %p286 = scmp.lt.s32.totalorder %s284, 1
      %s287 = scalar_select %p286, %s284, 1
      %p288 = scmp.lt.s32.totalorder %s285, 1
      %s289 = scalar_select %p288, %s285, 1
      %s290 = smul.addr %s287, 2
      %s291 = sadd.s32 %s289, %s290
      %s292 = smul.addr %s291, 8
      %s293 = scalar_lea.vmem %s1, %s292
      %s294 = sadd.s32 %s20, %s23
      %s295 = smul.u32 2, %s21
      %s296 = sadd.s32 %s20, %s23
      %s297 = smul.u32 2, %s21
      %p298 = scmp.lt.s32.totalorder %s296, 1
      %s299 = scalar_select %p298, %s296, 1
      %p300 = scmp.lt.s32.totalorder %s297, 1
      %s301 = scalar_select %p300, %s297, 1
      %s302 = smul.addr %s299, 2
      %s303 = sadd.s32 %s301, %s302
      %s304 = smul.addr %s303, 8
      %s305 = scalar_lea.vmem %s2, %s304
      %s306 = sadd.s32 %s20, %s23
      %s307 = smul.u32 2, %s21
      %s308 = sadd.s32 %s20, %s22
      %p309 = scmp.lt.s32.totalorder %s308, 1
      %s310 = scalar_select %p309, %s308, 1
      %p311 = scmp.lt.s32.totalorder %s21, 0
      %s312 = scalar_select %p311, %s21, 0
      %s313 = sadd.s32 %s312, %s310
      %s314 = smul.addr %s313, 8
      %s315 = scalar_lea.vmem %s3, %s314
      %s316 = sadd.s32 %s20, %s22
      %p317 = scmp.eq.s32.totalorder %s23, 0
      // Predicated region
      $region33: #{multi_head_attention.4} parent=31 // pred_check
        %p318 = pneg %p317
      $region34: #{multi_head_attention.4} parent=31 // pred_check_branch
        %320 = sbr.rel (%p318) target = $region36
      $region35: #{multi_head_attention.4} parent=31 // pred_region
        %vm321 = vcmask 7168
        %322 = vst.msk [vmem:[#allocation2] sm:$0xff] %vm321, -1e+30
        %323 = vst.msk [vmem:[#allocation2 + $0x8] sm:$0xff] %vm321, -1e+30
        %324 = vst.msk [vmem:[#allocation2 + $0x10] sm:$0xff] %vm321, -1e+30
        %325 = vst.msk [vmem:[#allocation2 + $0x18] sm:$0xff] %vm321, -1e+30
        %326 = vst.msk [vmem:[#allocation3] sm:$0xff] %vm321, 0.0
        %327 = vst.msk [vmem:[#allocation3 + $0x8] sm:$0xff] %vm321, 0.0
        %328 = vst.msk [vmem:[#allocation3 + $0x10] sm:$0xff] %vm321, 0.0
        %329 = vst.msk [vmem:[#allocation3 + $0x18] sm:$0xff] %vm321, 0.0
        %vm330 = vcmask 130048
        %331 = vst.msk [vmem:[#allocation4] sm:$0xff] %vm330, 0.0
        %332 = vst.msk [vmem:[#allocation4 + $0x8] sm:$0xff] %vm330, 0.0
        %333 = vst.msk [vmem:[#allocation4 + $0x10] sm:$0xff] %vm330, 0.0
        %334 = vst.msk [vmem:[#allocation4 + $0x18] sm:$0xff] %vm330, 0.0
      $region36: #{multi_head_attention.4} parent=31 // pred_fallthru
        _
      %s335 = smul.u32 %s22, 8
      %s336 = smul.u32 %s23, 8
      %s337 = sadd.s32 %s335, 7
      %p338 = scmp.le.s32.totalorder %s336, %s337
      // Predicated region
      $region37: #{multi_head_attention.4} parent=31 // pred_check
        %p339 = pneg %p338
      $region38: #{multi_head_attention.4} parent=31 // pred_check_branch
        %341 = sbr.rel (%p339) target = $region40
      $region39: #{multi_head_attention.4} parent=31 // pred_region
        %v342 = vlaneseq
        %v343 = vshrl.u32 %v342, 7
        %v344 = vstv %s335
        %v345 = vadd.s32 %v344, %v343
        %v346 = vlaneseq
        %v347 = vand.u32 %v346, 127
        %v348 = vstv %s336
        %v349 = vadd.s32 %v348, %v347
        %vm350 = vcmp.le.s32.totalorder %v349, %v345
        %v351 = vld [vmem:[%s281] sm:$0xff]
        %v352 = vmul.f32 %v351, 0.25
        %v353 = vld [vmem:[%s293] sm:$0xff]
        %v354 = vld [vmem:[%s305 + $0x8] sm:$0xff]
        %356 = vrot.lane.b32.xlu0 %v353, 64
        %v357 = vpop.permute.xlu0 %356
        %vm358 = vcmask 130048
        %v360 = vsel %vm358, %v352, 0
        %v362 = vsel %vm358, %v357, 0
        %364 = vmatprep.subr.mxu0 0.0
        %365 = vmatpush1.xpose.msra.mxu0 %v362
        %366 = vmatprep.subr.mxu0 0.0
        %367 = vmatpush1.xpose.msra.mxu0 0.0
        %368 = vmatprep.subr.mxu0 0.0
        %369 = vmatpush1.xpose.msra.mxu0 0.0
        %370 = vmatprep.subr.mxu0 0.0
        %371 = vmatpush1.xpose.msra.mxu0 0.0
        %372 = vmatprep.subr.mxu0 0.0
        %373 = vmatpush1.xpose.msra.mxu0 0.0
        %374 = vmatprep.subr.mxu0 0.0
        %375 = vmatpush1.xpose.msra.mxu0 0.0
        %376 = vmatprep.subr.mxu0 0.0
        %377 = vmatpush1.xpose.msra.mxu0 0.0
        %378 = vmatprep.subr.mxu0 0.0
        %379 = vmatpush1.xpose.msra.mxu0 0.0
        %380 = vmatprep.subr.mxu0 0.0
        %381 = vmatpush1.xpose.msra.mxu0 0.0
        %382 = vmatprep.subr.mxu0 0.0
        %383 = vmatpush1.xpose.msra.mxu0 0.0
        %384 = vmatprep.subr.mxu0 0.0
        %385 = vmatpush1.xpose.msra.mxu0 0.0
        %386 = vmatprep.subr.mxu0 0.0
        %387 = vmatpush1.xpose.msra.mxu0 0.0
        %388 = vmatprep.subr.mxu0 0.0
        %389 = vmatpush1.xpose.msra.mxu0 0.0
        %390 = vmatprep.subr.mxu0 0.0
        %391 = vmatpush1.xpose.msra.mxu0 0.0
        %392 = vmatprep.subr.mxu0 0.0
        %393 = vmatpush1.xpose.msra.mxu0 0.0
        %394 = vmatprep.subr.mxu0 0.0
        %395 = vmatpush1.xpose.msra.mxu0 0.0
        %396 = vmatprep.subr.mxu0 0.0
        %397 = vmatpush1.xpose.msra.mxu0 0.0
        %398 = vmatprep.subr.mxu0 0.0
        %399 = vmatpush1.xpose.msra.mxu0 0.0
        %400 = vmatprep.subr.mxu0 0.0
        %401 = vmatpush1.xpose.msra.mxu0 0.0
        %402 = vmatprep.subr.mxu0 0.0
        %403 = vmatpush1.xpose.msra.mxu0 0.0
        %404 = vmatprep.subr.mxu0 0.0
        %405 = vmatpush1.xpose.msra.mxu0 0.0
        %406 = vmatprep.subr.mxu0 0.0
        %407 = vmatpush1.xpose.msra.mxu0 0.0
        %408 = vmatprep.subr.mxu0 0.0
        %409 = vmatpush1.xpose.msra.mxu0 0.0
        %410 = vmatprep.subr.mxu0 0.0
        %411 = vmatpush1.xpose.msra.mxu0 0.0
        %412 = vmatprep.subr.mxu0 0.0
        %413 = vmatpush1.xpose.msra.mxu0 0.0
        %414 = vmatprep.subr.mxu0 0.0
        %415 = vmatpush1.xpose.msra.mxu0 0.0
        %416 = vmatprep.subr.mxu0 0.0
        %417 = vmatpush1.xpose.msra.mxu0 0.0
        %418 = vmatprep.subr.mxu0 0.0
        %419 = vmatpush1.xpose.msra.mxu0 0.0
        %420 = vmatprep.subr.mxu0 0.0
        %421 = vmatpush1.xpose.msra.mxu0 0.0
        %422 = vmatprep.subr.mxu0 0.0
        %423 = vmatpush1.xpose.msra.mxu0 0.0
        %424 = vmatprep.subr.mxu0 0.0
        %425 = vmatpush1.xpose.msra.mxu0 0.0
        %426 = vmatprep.subr.mxu0 0.0
        %427 = vmatpush1.xpose.msra.mxu0 0.0
        %428 = vmatprep.mubr.f32.mxu0 0.0
        %429 = vmatmul.mubr.f32.gmra.mrb[0].mxu0 %v360
        %v430 = vpop.f32.mrb[0].mxu0
        %v431 = vadd.f32 0.0, %v430
        %v432 = vpop.f32.mrb[0].mxu0
        %433 = vdwg.mxu0
        %v434 = vsel %vm350, %v431, -1e+30
        %v435 = vld [vmem:[#allocation2] sm:$0xff]
        %vm436 = vcmask 64512
        %v437 = vsel %vm436, %v434, -inf
        %438 = vmax.xlane.f32.xlu0 %v437
        %v439 = vpop.xlane.xlu0 %438
        %v440 = vmax.f32 %v435, %v439
        %v441 = vsub.f32 %v435, %v440
        %v442 = vmul.f32 %v441, 1.442695
        %v443 = vpow.pop %v442
        %445 = vset.pattern.permute.xlu0 0
        %446 = vperm.xlu0 %445, %v440
        %v447 = vpop.permute.xlu0 %446
        %v449 = vsub.f32 %v434, %v447
        %v450 = vmul.f32 %v449, 1.442695
        %v451 = vpow.pop %v450
        %v452 = vld [vmem:[#allocation3] sm:$0xff]
        %v453 = vmul.f32 %v443, %v452
        %v454 = vsel %vm436, %v451, 0.0
        %455 = vadd.xlane.f32.xlu0 %v454
        %v456 = vpop.xlane.xlu0 %455
        %v457 = vadd.f32 %v453, %v456
        %vm458 = vcmask 7168
        %459 = vst.msk [vmem:[#allocation3] sm:$0xff] %vm458, %v457
        %v460 = vld [vmem:[#allocation4] sm:$0xff]
        %462 = vset.pattern.permute.xlu0 0
        %463 = vperm.xlu0 %462, %v443
        %v464 = vpop.permute.xlu0 %463
        %v466 = vmul.f32 %v464, %v460
        %v468 = vsel %vm436, %v451, 0
        %470 = vmatprep.subr.mxu0 0.0
        %471 = vmatpush1.msra.mxu0 %v354
        %472 = vmatprep.subr.mxu0 0.0
        %473 = vmatpush1.msra.mxu0 0.0
        %474 = vmatprep.subr.mxu0 0.0
        %475 = vmatpush1.msra.mxu0 0.0
        %476 = vmatprep.subr.mxu0 0.0
        %477 = vmatpush1.msra.mxu0 0.0
        %478 = vmatprep.subr.mxu0 0.0
        %479 = vmatpush1.msra.mxu0 0.0
        %480 = vmatprep.subr.mxu0 0.0
        %481 = vmatpush1.msra.mxu0 0.0
        %482 = vmatprep.subr.mxu0 0.0
        %483 = vmatpush1.msra.mxu0 0.0
        %484 = vmatprep.subr.mxu0 0.0
        %485 = vmatpush1.msra.mxu0 0.0
        %486 = vmatprep.subr.mxu0 0.0
        %487 = vmatpush1.msra.mxu0 0.0
        %488 = vmatprep.subr.mxu0 0.0
        %489 = vmatpush1.msra.mxu0 0.0
        %490 = vmatprep.subr.mxu0 0.0
        %491 = vmatpush1.msra.mxu0 0.0
        %492 = vmatprep.subr.mxu0 0.0
        %493 = vmatpush1.msra.mxu0 0.0
        %494 = vmatprep.subr.mxu0 0.0
        %495 = vmatpush1.msra.mxu0 0.0
        %496 = vmatprep.subr.mxu0 0.0
        %497 = vmatpush1.msra.mxu0 0.0
        %498 = vmatprep.subr.mxu0 0.0
        %499 = vmatpush1.msra.mxu0 0.0
        %500 = vmatprep.subr.mxu0 0.0
        %501 = vmatpush1.msra.mxu0 0.0
        %502 = vmatprep.subr.mxu0 0.0
        %503 = vmatpush1.msra.mxu0 0.0
        %504 = vmatprep.subr.mxu0 0.0
        %505 = vmatpush1.msra.mxu0 0.0
        %506 = vmatprep.subr.mxu0 0.0
        %507 = vmatpush1.msra.mxu0 0.0
        %508 = vmatprep.subr.mxu0 0.0
        %509 = vmatpush1.msra.mxu0 0.0
        %510 = vmatprep.subr.mxu0 0.0
        %511 = vmatpush1.msra.mxu0 0.0
        %512 = vmatprep.subr.mxu0 0.0
        %513 = vmatpush1.msra.mxu0 0.0
        %514 = vmatprep.subr.mxu0 0.0
        %515 = vmatpush1.msra.mxu0 0.0
        %516 = vmatprep.subr.mxu0 0.0
        %517 = vmatpush1.msra.mxu0 0.0
        %518 = vmatprep.subr.mxu0 0.0
        %519 = vmatpush1.msra.mxu0 0.0
        %520 = vmatprep.subr.mxu0 0.0
        %521 = vmatpush1.msra.mxu0 0.0
        %522 = vmatprep.subr.mxu0 0.0
        %523 = vmatpush1.msra.mxu0 0.0
        %524 = vmatprep.subr.mxu0 0.0
        %525 = vmatpush1.msra.mxu0 0.0
        %526 = vmatprep.subr.mxu0 0.0
        %527 = vmatpush1.msra.mxu0 0.0
        %528 = vmatprep.subr.mxu0 0.0
        %529 = vmatpush1.msra.mxu0 0.0
        %530 = vmatprep.subr.mxu0 0.0
        %531 = vmatpush1.msra.mxu0 0.0
        %532 = vmatprep.subr.mxu0 0.0
        %533 = vmatpush1.msra.mxu0 0.0
        %534 = vmatprep.mubr.f32.mxu0 0.0
        %535 = vmatmul.mubr.f32.gmra.mrb[0].mxu0 %v468
        %v536 = vpop.f32.mrb[0].mxu0
        %v537 = vadd.f32 0.0, %v536
        %v538 = vpop.f32.mrb[0].mxu0
        %539 = vdwg.mxu0
        %v540 = vadd.f32 %v466, %v537
        %541 = vst.msk [vmem:[#allocation4] sm:$0xff] %vm358, %v540
        %542 = vst.msk [vmem:[#allocation2] sm:$0xff] %vm458, %v440
        %v543 = vld [vmem:[%s281] sm:$0xff]
        %v544 = vmul.f32 %v543, 0.25
        %v545 = vld [vmem:[%s293] sm:$0xff]
        %v546 = vld [vmem:[%s305 + $0x8] sm:$0xff]
        %548 = vrot.lane.b32.xlu0 %v544, 112
        %v549 = vpop.permute.xlu0 %548
        %551 = vrot.lane.b32.xlu0 %v545, 48
        %v552 = vpop.permute.xlu0 %551
        %v553 = vsel %vm358, %v549, 0
        %v555 = vsel %vm358, %v552, 0
        %557 = vmatprep.subr.mxu0 0.0
        %558 = vmatpush1.xpose.msra.mxu0 %v555
        %559 = vmatprep.subr.mxu0 0.0
        %560 = vmatpush1.xpose.msra.mxu0 0.0
        %561 = vmatprep.subr.mxu0 0.0
        %562 = vmatpush1.xpose.msra.mxu0 0.0
        %563 = vmatprep.subr.mxu0 0.0
        %564 = vmatpush1.xpose.msra.mxu0 0.0
        %565 = vmatprep.subr.mxu0 0.0
        %566 = vmatpush1.xpose.msra.mxu0 0.0
        %567 = vmatprep.subr.mxu0 0.0
        %568 = vmatpush1.xpose.msra.mxu0 0.0
        %569 = vmatprep.subr.mxu0 0.0
        %570 = vmatpush1.xpose.msra.mxu0 0.0
        %571 = vmatprep.subr.mxu0 0.0
        %572 = vmatpush1.xpose.msra.mxu0 0.0
        %573 = vmatprep.subr.mxu0 0.0
        %574 = vmatpush1.xpose.msra.mxu0 0.0
        %575 = vmatprep.subr.mxu0 0.0
        %576 = vmatpush1.xpose.msra.mxu0 0.0
        %577 = vmatprep.subr.mxu0 0.0
        %578 = vmatpush1.xpose.msra.mxu0 0.0
        %579 = vmatprep.subr.mxu0 0.0
        %580 = vmatpush1.xpose.msra.mxu0 0.0
        %581 = vmatprep.subr.mxu0 0.0
        %582 = vmatpush1.xpose.msra.mxu0 0.0
        %583 = vmatprep.subr.mxu0 0.0
        %584 = vmatpush1.xpose.msra.mxu0 0.0
        %585 = vmatprep.subr.mxu0 0.0
        %586 = vmatpush1.xpose.msra.mxu0 0.0
        %587 = vmatprep.subr.mxu0 0.0
        %588 = vmatpush1.xpose.msra.mxu0 0.0
        %589 = vmatprep.subr.mxu0 0.0
        %590 = vmatpush1.xpose.msra.mxu0 0.0
        %591 = vmatprep.subr.mxu0 0.0
        %592 = vmatpush1.xpose.msra.mxu0 0.0
        %593 = vmatprep.subr.mxu0 0.0
        %594 = vmatpush1.xpose.msra.mxu0 0.0
        %595 = vmatprep.subr.mxu0 0.0
        %596 = vmatpush1.xpose.msra.mxu0 0.0
        %597 = vmatprep.subr.mxu0 0.0
        %598 = vmatpush1.xpose.msra.mxu0 0.0
        %599 = vmatprep.subr.mxu0 0.0
        %600 = vmatpush1.xpose.msra.mxu0 0.0
        %601 = vmatprep.subr.mxu0 0.0
        %602 = vmatpush1.xpose.msra.mxu0 0.0
        %603 = vmatprep.subr.mxu0 0.0
        %604 = vmatpush1.xpose.msra.mxu0 0.0
        %605 = vmatprep.subr.mxu0 0.0
        %606 = vmatpush1.xpose.msra.mxu0 0.0
        %607 = vmatprep.subr.mxu0 0.0
        %608 = vmatpush1.xpose.msra.mxu0 0.0
        %609 = vmatprep.subr.mxu0 0.0
        %610 = vmatpush1.xpose.msra.mxu0 0.0
        %611 = vmatprep.subr.mxu0 0.0
        %612 = vmatpush1.xpose.msra.mxu0 0.0
        %613 = vmatprep.subr.mxu0 0.0
        %614 = vmatpush1.xpose.msra.mxu0 0.0
        %615 = vmatprep.subr.mxu0 0.0
        %616 = vmatpush1.xpose.msra.mxu0 0.0
        %617 = vmatprep.subr.mxu0 0.0
        %618 = vmatpush1.xpose.msra.mxu0 0.0
        %619 = vmatprep.subr.mxu0 0.0
        %620 = vmatpush1.xpose.msra.mxu0 0.0
        %621 = vmatprep.mubr.f32.mxu0 0.0
        %622 = vmatmul.mubr.f32.gmra.mrb[0].mxu0 %v553
        %v623 = vpop.f32.mrb[0].mxu0
        %v624 = vadd.f32 0.0, %v623
        %v625 = vpop.f32.mrb[0].mxu0
        %626 = vdwg.mxu0
        %v627 = vsel %vm350, %v624, -1e+30
        %s628 = scalar_lea.vmem [#allocation2], 8
        %v629 = vld [vmem:[%s628] sm:$0xff]
        %v630 = vsel %vm436, %v627, -inf
        %631 = vmax.xlane.f32.xlu0 %v630
        %v632 = vpop.xlane.xlu0 %631
        %v633 = vmax.f32 %v629, %v632
        %v634 = vsub.f32 %v629, %v633
        %v635 = vmul.f32 %v634, 1.442695
        %v636 = vpow.pop %v635
        %638 = vset.pattern.permute.xlu0 0
        %639 = vperm.xlu0 %638, %v633
        %v640 = vpop.permute.xlu0 %639
        %v642 = vsub.f32 %v627, %v640
        %v643 = vmul.f32 %v642, 1.442695
        %v644 = vpow.pop %v643
        %s645 = scalar_lea.vmem [#allocation3], 8
        %v646 = vld [vmem:[%s645] sm:$0xff]
        %v647 = vmul.f32 %v636, %v646
        %v648 = vsel %vm436, %v644, 0.0
        %649 = vadd.xlane.f32.xlu0 %v648
        %v650 = vpop.xlane.xlu0 %649
        %v651 = vadd.f32 %v647, %v650
        %652 = vst.msk [vmem:[%s645] sm:$0xff] %vm458, %v651
        %s653 = scalar_lea.vmem [#allocation4], 8
        %v654 = vld [vmem:[%s653] sm:$0xff]
        %656 = vset.pattern.permute.xlu0 0
        %657 = vperm.xlu0 %656, %v636
        %v658 = vpop.permute.xlu0 %657
        %v660 = vmul.f32 %v658, %v654
        %662 = vrot.lane.b32.xlu0 %v546, 112
        %v663 = vpop.permute.xlu0 %662
        %v666 = vsel %vm436, %v644, 0
        %668 = vmatprep.subr.mxu0 0.0
        %669 = vmatpush1.msra.mxu0 %v663
        %670 = vmatprep.subr.mxu0 0.0
        %671 = vmatpush1.msra.mxu0 0.0
        %672 = vmatprep.subr.mxu0 0.0
        %673 = vmatpush1.msra.mxu0 0.0
        %674 = vmatprep.subr.mxu0 0.0
        %675 = vmatpush1.msra.mxu0 0.0
        %676 = vmatprep.subr.mxu0 0.0
        %677 = vmatpush1.msra.mxu0 0.0
        %678 = vmatprep.subr.mxu0 0.0
        %679 = vmatpush1.msra.mxu0 0.0
        %680 = vmatprep.subr.mxu0 0.0
        %681 = vmatpush1.msra.mxu0 0.0
        %682 = vmatprep.subr.mxu0 0.0
        %683 = vmatpush1.msra.mxu0 0.0
        %684 = vmatprep.subr.mxu0 0.0
        %685 = vmatpush1.msra.mxu0 0.0
        %686 = vmatprep.subr.mxu0 0.0
        %687 = vmatpush1.msra.mxu0 0.0
        %688 = vmatprep.subr.mxu0 0.0
        %689 = vmatpush1.msra.mxu0 0.0
        %690 = vmatprep.subr.mxu0 0.0
        %691 = vmatpush1.msra.mxu0 0.0
        %692 = vmatprep.subr.mxu0 0.0
        %693 = vmatpush1.msra.mxu0 0.0
        %694 = vmatprep.subr.mxu0 0.0
        %695 = vmatpush1.msra.mxu0 0.0
        %696 = vmatprep.subr.mxu0 0.0
        %697 = vmatpush1.msra.mxu0 0.0
        %698 = vmatprep.subr.mxu0 0.0
        %699 = vmatpush1.msra.mxu0 0.0
        %700 = vmatprep.subr.mxu0 0.0
        %701 = vmatpush1.msra.mxu0 0.0
        %702 = vmatprep.subr.mxu0 0.0
        %703 = vmatpush1.msra.mxu0 0.0
        %704 = vmatprep.subr.mxu0 0.0
        %705 = vmatpush1.msra.mxu0 0.0
        %706 = vmatprep.subr.mxu0 0.0
        %707 = vmatpush1.msra.mxu0 0.0
        %708 = vmatprep.subr.mxu0 0.0
        %709 = vmatpush1.msra.mxu0 0.0
        %710 = vmatprep.subr.mxu0 0.0
        %711 = vmatpush1.msra.mxu0 0.0
        %712 = vmatprep.subr.mxu0 0.0
        %713 = vmatpush1.msra.mxu0 0.0
        %714 = vmatprep.subr.mxu0 0.0
        %715 = vmatpush1.msra.mxu0 0.0
        %716 = vmatprep.subr.mxu0 0.0
        %717 = vmatpush1.msra.mxu0 0.0
        %718 = vmatprep.subr.mxu0 0.0
        %719 = vmatpush1.msra.mxu0 0.0
        %720 = vmatprep.subr.mxu0 0.0
        %721 = vmatpush1.msra.mxu0 0.0
        %722 = vmatprep.subr.mxu0 0.0
        %723 = vmatpush1.msra.mxu0 0.0
        %724 = vmatprep.subr.mxu0 0.0
        %725 = vmatpush1.msra.mxu0 0.0
        %726 = vmatprep.subr.mxu0 0.0
        %727 = vmatpush1.msra.mxu0 0.0
        %728 = vmatprep.subr.mxu0 0.0
        %729 = vmatpush1.msra.mxu0 0.0
        %730 = vmatprep.subr.mxu0 0.0
        %731 = vmatpush1.msra.mxu0 0.0
        %732 = vmatprep.mubr.f32.mxu0 0.0
        %733 = vmatmul.mubr.f32.gmra.mrb[0].mxu0 %v666
        %v734 = vpop.f32.mrb[0].mxu0
        %v735 = vadd.f32 0.0, %v734
        %v736 = vpop.f32.mrb[0].mxu0
        %737 = vdwg.mxu0
        %v738 = vadd.f32 %v660, %v735
        %739 = vst.msk [vmem:[%s653] sm:$0xff] %vm358, %v738
        %740 = vst.msk [vmem:[%s628] sm:$0xff] %vm458, %v633
        %v741 = vld [vmem:[%s281] sm:$0xff]
        %v742 = vmul.f32 %v741, 0.25
        %v743 = vld [vmem:[%s293] sm:$0xff]
        %v744 = vld [vmem:[%s305 + $0x8] sm:$0xff]
        %746 = vrot.lane.b32.xlu0 %v742, 96
        %v747 = vpop.permute.xlu0 %746
        %749 = vrot.lane.b32.xlu0 %v743, 32
        %v750 = vpop.permute.xlu0 %749
        %v751 = vsel %vm358, %v747, 0
        %v753 = vsel %vm358, %v750, 0
        %755 = vmatprep.subr.mxu0 0.0
        %756 = vmatpush1.xpose.msra.mxu0 %v753
        %757 = vmatprep.subr.mxu0 0.0
        %758 = vmatpush1.xpose.msra.mxu0 0.0
        %759 = vmatprep.subr.mxu0 0.0
        %760 = vmatpush1.xpose.msra.mxu0 0.0
        %761 = vmatprep.subr.mxu0 0.0
        %762 = vmatpush1.xpose.msra.mxu0 0.0
        %763 = vmatprep.subr.mxu0 0.0
        %764 = vmatpush1.xpose.msra.mxu0 0.0
        %765 = vmatprep.subr.mxu0 0.0
        %766 = vmatpush1.xpose.msra.mxu0 0.0
        %767 = vmatprep.subr.mxu0 0.0
        %768 = vmatpush1.xpose.msra.mxu0 0.0
        %769 = vmatprep.subr.mxu0 0.0
        %770 = vmatpush1.xpose.msra.mxu0 0.0
        %771 = vmatprep.subr.mxu0 0.0
        %772 = vmatpush1.xpose.msra.mxu0 0.0
        %773 = vmatprep.subr.mxu0 0.0
        %774 = vmatpush1.xpose.msra.mxu0 0.0
        %775 = vmatprep.subr.mxu0 0.0
        %776 = vmatpush1.xpose.msra.mxu0 0.0
        %777 = vmatprep.subr.mxu0 0.0
        %778 = vmatpush1.xpose.msra.mxu0 0.0
        %779 = vmatprep.subr.mxu0 0.0
        %780 = vmatpush1.xpose.msra.mxu0 0.0
        %781 = vmatprep.subr.mxu0 0.0
        %782 = vmatpush1.xpose.msra.mxu0 0.0
        %783 = vmatprep.subr.mxu0 0.0
        %784 = vmatpush1.xpose.msra.mxu0 0.0
        %785 = vmatprep.subr.mxu0 0.0
        %786 = vmatpush1.xpose.msra.mxu0 0.0
        %787 = vmatprep.subr.mxu0 0.0
        %788 = vmatpush1.xpose.msra.mxu0 0.0
        %789 = vmatprep.subr.mxu0 0.0
        %790 = vmatpush1.xpose.msra.mxu0 0.0
        %791 = vmatprep.subr.mxu0 0.0
        %792 = vmatpush1.xpose.msra.mxu0 0.0
        %793 = vmatprep.subr.mxu0 0.0
        %794 = vmatpush1.xpose.msra.mxu0 0.0
        %795 = vmatprep.subr.mxu0 0.0
        %796 = vmatpush1.xpose.msra.mxu0 0.0
        %797 = vmatprep.subr.mxu0 0.0
        %798 = vmatpush1.xpose.msra.mxu0 0.0
        %799 = vmatprep.subr.mxu0 0.0
        %800 = vmatpush1.xpose.msra.mxu0 0.0
        %801 = vmatprep.subr.mxu0 0.0
        %802 = vmatpush1.xpose.msra.mxu0 0.0
        %803 = vmatprep.subr.mxu0 0.0
        %804 = vmatpush1.xpose.msra.mxu0 0.0
        %805 = vmatprep.subr.mxu0 0.0
        %806 = vmatpush1.xpose.msra.mxu0 0.0
        %807 = vmatprep.subr.mxu0 0.0
        %808 = vmatpush1.xpose.msra.mxu0 0.0
        %809 = vmatprep.subr.mxu0 0.0
        %810 = vmatpush1.xpose.msra.mxu0 0.0
        %811 = vmatprep.subr.mxu0 0.0
        %812 = vmatpush1.xpose.msra.mxu0 0.0
        %813 = vmatprep.subr.mxu0 0.0
        %814 = vmatpush1.xpose.msra.mxu0 0.0
        %815 = vmatprep.subr.mxu0 0.0
        %816 = vmatpush1.xpose.msra.mxu0 0.0
        %817 = vmatprep.subr.mxu0 0.0
        %818 = vmatpush1.xpose.msra.mxu0 0.0
        %819 = vmatprep.mubr.f32.mxu0 0.0
        %820 = vmatmul.mubr.f32.gmra.mrb[0].mxu0 %v751
        %v821 = vpop.f32.mrb[0].mxu0
        %v822 = vadd.f32 0.0, %v821
        %v823 = vpop.f32.mrb[0].mxu0
        %824 = vdwg.mxu0
        %v825 = vsel %vm350, %v822, -1e+30
        %s826 = scalar_lea.vmem [#allocation2], 16
        %v827 = vld [vmem:[%s826] sm:$0xff]
        %v828 = vsel %vm436, %v825, -inf
        %829 = vmax.xlane.f32.xlu0 %v828
        %v830 = vpop.xlane.xlu0 %829
        %v831 = vmax.f32 %v827, %v830
        %v832 = vsub.f32 %v827, %v831
        %v833 = vmul.f32 %v832, 1.442695
        %v834 = vpow.pop %v833
        %836 = vset.pattern.permute.xlu0 0
        %837 = vperm.xlu0 %836, %v831
        %v838 = vpop.permute.xlu0 %837
        %v840 = vsub.f32 %v825, %v838
        %v841 = vmul.f32 %v840, 1.442695
        %v842 = vpow.pop %v841
        %s843 = scalar_lea.vmem [#allocation3], 16
        %v844 = vld [vmem:[%s843] sm:$0xff]
        %v845 = vmul.f32 %v834, %v844
        %v846 = vsel %vm436, %v842, 0.0
        %847 = vadd.xlane.f32.xlu0 %v846
        %v848 = vpop.xlane.xlu0 %847
        %v849 = vadd.f32 %v845, %v848
        %850 = vst.msk [vmem:[%s843] sm:$0xff] %vm458, %v849
        %s851 = scalar_lea.vmem [#allocation4], 16
        %v852 = vld [vmem:[%s851] sm:$0xff]
        %854 = vset.pattern.permute.xlu0 0
        %855 = vperm.xlu0 %854, %v834
        %v856 = vpop.permute.xlu0 %855
        %v858 = vmul.f32 %v856, %v852
        %860 = vrot.lane.b32.xlu0 %v744, 96
        %v861 = vpop.permute.xlu0 %860
        %v864 = vsel %vm436, %v842, 0
        %866 = vmatprep.subr.mxu0 0.0
        %867 = vmatpush1.msra.mxu0 %v861
        %868 = vmatprep.subr.mxu0 0.0
        %869 = vmatpush1.msra.mxu0 0.0
        %870 = vmatprep.subr.mxu0 0.0
        %871 = vmatpush1.msra.mxu0 0.0
        %872 = vmatprep.subr.mxu0 0.0
        %873 = vmatpush1.msra.mxu0 0.0
        %874 = vmatprep.subr.mxu0 0.0
        %875 = vmatpush1.msra.mxu0 0.0
        %876 = vmatprep.subr.mxu0 0.0
        %877 = vmatpush1.msra.mxu0 0.0
        %878 = vmatprep.subr.mxu0 0.0
        %879 = vmatpush1.msra.mxu0 0.0
        %880 = vmatprep.subr.mxu0 0.0
        %881 = vmatpush1.msra.mxu0 0.0
        %882 = vmatprep.subr.mxu0 0.0
        %883 = vmatpush1.msra.mxu0 0.0
        %884 = vmatprep.subr.mxu0 0.0
        %885 = vmatpush1.msra.mxu0 0.0
        %886 = vmatprep.subr.mxu0 0.0
        %887 = vmatpush1.msra.mxu0 0.0
        %888 = vmatprep.subr.mxu0 0.0
        %889 = vmatpush1.msra.mxu0 0.0
        %890 = vmatprep.subr.mxu0 0.0
        %891 = vmatpush1.msra.mxu0 0.0
        %892 = vmatprep.subr.mxu0 0.0
        %893 = vmatpush1.msra.mxu0 0.0
        %894 = vmatprep.subr.mxu0 0.0
        %895 = vmatpush1.msra.mxu0 0.0
        %896 = vmatprep.subr.mxu0 0.0
        %897 = vmatpush1.msra.mxu0 0.0
        %898 = vmatprep.subr.mxu0 0.0
        %899 = vmatpush1.msra.mxu0 0.0
        %900 = vmatprep.subr.mxu0 0.0
        %901 = vmatpush1.msra.mxu0 0.0
        %902 = vmatprep.subr.mxu0 0.0
        %903 = vmatpush1.msra.mxu0 0.0
        %904 = vmatprep.subr.mxu0 0.0
        %905 = vmatpush1.msra.mxu0 0.0
        %906 = vmatprep.subr.mxu0 0.0
        %907 = vmatpush1.msra.mxu0 0.0
        %908 = vmatprep.subr.mxu0 0.0
        %909 = vmatpush1.msra.mxu0 0.0
        %910 = vmatprep.subr.mxu0 0.0
        %911 = vmatpush1.msra.mxu0 0.0
        %912 = vmatprep.subr.mxu0 0.0
        %913 = vmatpush1.msra.mxu0 0.0
        %914 = vmatprep.subr.mxu0 0.0
        %915 = vmatpush1.msra.mxu0 0.0
        %916 = vmatprep.subr.mxu0 0.0
        %917 = vmatpush1.msra.mxu0 0.0
        %918 = vmatprep.subr.mxu0 0.0
        %919 = vmatpush1.msra.mxu0 0.0
        %920 = vmatprep.subr.mxu0 0.0
        %921 = vmatpush1.msra.mxu0 0.0
        %922 = vmatprep.subr.mxu0 0.0
        %923 = vmatpush1.msra.mxu0 0.0
        %924 = vmatprep.subr.mxu0 0.0
        %925 = vmatpush1.msra.mxu0 0.0
        %926 = vmatprep.subr.mxu0 0.0
        %927 = vmatpush1.msra.mxu0 0.0
        %928 = vmatprep.subr.mxu0 0.0
        %929 = vmatpush1.msra.mxu0 0.0
        %930 = vmatprep.mubr.f32.mxu0 0.0
        %931 = vmatmul.mubr.f32.gmra.mrb[0].mxu0 %v864
        %v932 = vpop.f32.mrb[0].mxu0
        %v933 = vadd.f32 0.0, %v932
        %v934 = vpop.f32.mrb[0].mxu0
        %935 = vdwg.mxu0
        %v936 = vadd.f32 %v858, %v933
        %937 = vst.msk [vmem:[%s851] sm:$0xff] %vm358, %v936
        %938 = vst.msk [vmem:[%s826] sm:$0xff] %vm458, %v831
        %v939 = vld [vmem:[%s281] sm:$0xff]
        %v940 = vmul.f32 %v939, 0.25
        %v941 = vld [vmem:[%s293] sm:$0xff]
        %v942 = vld [vmem:[%s305 + $0x8] sm:$0xff]
        %944 = vrot.lane.b32.xlu0 %v940, 80
        %v945 = vpop.permute.xlu0 %944
        %947 = vrot.lane.b32.xlu0 %v941, 16
        %v948 = vpop.permute.xlu0 %947
        %v949 = vsel %vm358, %v945, 0
        %v951 = vsel %vm358, %v948, 0
        %953 = vmatprep.subr.mxu0 0.0
        %954 = vmatpush1.xpose.msra.mxu0 %v951
        %955 = vmatprep.subr.mxu0 0.0
        %956 = vmatpush1.xpose.msra.mxu0 0.0
        %957 = vmatprep.subr.mxu0 0.0
        %958 = vmatpush1.xpose.msra.mxu0 0.0
        %959 = vmatprep.subr.mxu0 0.0
        %960 = vmatpush1.xpose.msra.mxu0 0.0
        %961 = vmatprep.subr.mxu0 0.0
        %962 = vmatpush1.xpose.msra.mxu0 0.0
        %963 = vmatprep.subr.mxu0 0.0
        %964 = vmatpush1.xpose.msra.mxu0 0.0
        %965 = vmatprep.subr.mxu0 0.0
        %966 = vmatpush1.xpose.msra.mxu0 0.0
        %967 = vmatprep.subr.mxu0 0.0
        %968 = vmatpush1.xpose.msra.mxu0 0.0
        %969 = vmatprep.subr.mxu0 0.0
        %970 = vmatpush1.xpose.msra.mxu0 0.0
        %971 = vmatprep.subr.mxu0 0.0
        %972 = vmatpush1.xpose.msra.mxu0 0.0
        %973 = vmatprep.subr.mxu0 0.0
        %974 = vmatpush1.xpose.msra.mxu0 0.0
        %975 = vmatprep.subr.mxu0 0.0
        %976 = vmatpush1.xpose.msra.mxu0 0.0
        %977 = vmatprep.subr.mxu0 0.0
        %978 = vmatpush1.xpose.msra.mxu0 0.0
        %979 = vmatprep.subr.mxu0 0.0
        %980 = vmatpush1.xpose.msra.mxu0 0.0
        %981 = vmatprep.subr.mxu0 0.0
        %982 = vmatpush1.xpose.msra.mxu0 0.0
        %983 = vmatprep.subr.mxu0 0.0
        %984 = vmatpush1.xpose.msra.mxu0 0.0
        %985 = vmatprep.subr.mxu0 0.0
        %986 = vmatpush1.xpose.msra.mxu0 0.0
        %987 = vmatprep.subr.mxu0 0.0
        %988 = vmatpush1.xpose.msra.mxu0 0.0
        %989 = vmatprep.subr.mxu0 0.0
        %990 = vmatpush1.xpose.msra.mxu0 0.0
        %991 = vmatprep.subr.mxu0 0.0
        %992 = vmatpush1.xpose.msra.mxu0 0.0
        %993 = vmatprep.subr.mxu0 0.0
        %994 = vmatpush1.xpose.msra.mxu0 0.0
        %995 = vmatprep.subr.mxu0 0.0
        %996 = vmatpush1.xpose.msra.mxu0 0.0
        %997 = vmatprep.subr.mxu0 0.0
        %998 = vmatpush1.xpose.msra.mxu0 0.0
        %999 = vmatprep.subr.mxu0 0.0
        %1000 = vmatpush1.xpose.msra.mxu0 0.0
        %1001 = vmatprep.subr.mxu0 0.0
        %1002 = vmatpush1.xpose.msra.mxu0 0.0
        %1003 = vmatprep.subr.mxu0 0.0
        %1004 = vmatpush1.xpose.msra.mxu0 0.0
        %1005 = vmatprep.subr.mxu0 0.0
        %1006 = vmatpush1.xpose.msra.mxu0 0.0
        %1007 = vmatprep.subr.mxu0 0.0
        %1008 = vmatpush1.xpose.msra.mxu0 0.0
        %1009 = vmatprep.subr.mxu0 0.0
        %1010 = vmatpush1.xpose.msra.mxu0 0.0
        %1011 = vmatprep.subr.mxu0 0.0
        %1012 = vmatpush1.xpose.msra.mxu0 0.0
        %1013 = vmatprep.subr.mxu0 0.0
        %1014 = vmatpush1.xpose.msra.mxu0 0.0
        %1015 = vmatprep.subr.mxu0 0.0
        %1016 = vmatpush1.xpose.msra.mxu0 0.0
        %1017 = vmatprep.mubr.f32.mxu0 0.0
        %1018 = vmatmul.mubr.f32.gmra.mrb[0].mxu0 %v949
        %v1019 = vpop.f32.mrb[0].mxu0
        %v1020 = vadd.f32 0.0, %v1019
        %v1021 = vpop.f32.mrb[0].mxu0
        %1022 = vdwg.mxu0
        %v1023 = vsel %vm350, %v1020, -1e+30
        %s1024 = scalar_lea.vmem [#allocation2], 24
        %v1025 = vld [vmem:[%s1024] sm:$0xff]
        %v1026 = vsel %vm436, %v1023, -inf
        %1027 = vmax.xlane.f32.xlu0 %v1026
        %v1028 = vpop.xlane.xlu0 %1027
        %v1029 = vmax.f32 %v1025, %v1028
        %v1030 = vsub.f32 %v1025, %v1029
        %v1031 = vmul.f32 %v1030, 1.442695
        %v1032 = vpow.pop %v1031
        %1034 = vset.pattern.permute.xlu0 0
        %1035 = vperm.xlu0 %1034, %v1029
        %v1036 = vpop.permute.xlu0 %1035
        %v1038 = vsub.f32 %v1023, %v1036
        %v1039 = vmul.f32 %v1038, 1.442695
        %v1040 = vpow.pop %v1039
        %s1041 = scalar_lea.vmem [#allocation3], 24
        %v1042 = vld [vmem:[%s1041] sm:$0xff]
        %v1043 = vmul.f32 %v1032, %v1042
        %v1044 = vsel %vm436, %v1040, 0.0
        %1045 = vadd.xlane.f32.xlu0 %v1044
        %v1046 = vpop.xlane.xlu0 %1045
        %v1047 = vadd.f32 %v1043, %v1046
        %1048 = vst.msk [vmem:[%s1041] sm:$0xff] %vm458, %v1047
        %s1049 = scalar_lea.vmem [#allocation4], 24
        %v1050 = vld [vmem:[%s1049] sm:$0xff]
        %1052 = vset.pattern.permute.xlu0 0
        %1053 = vperm.xlu0 %1052, %v1032
        %v1054 = vpop.permute.xlu0 %1053
        %v1056 = vmul.f32 %v1054, %v1050
        %1058 = vrot.lane.b32.xlu0 %v942, 80
        %v1059 = vpop.permute.xlu0 %1058
        %v1062 = vsel %vm436, %v1040, 0
        %1064 = vmatprep.subr.mxu0 0.0
        %1065 = vmatpush1.msra.mxu0 %v1059
        %1066 = vmatprep.subr.mxu0 0.0
        %1067 = vmatpush1.msra.mxu0 0.0
        %1068 = vmatprep.subr.mxu0 0.0
        %1069 = vmatpush1.msra.mxu0 0.0
        %1070 = vmatprep.subr.mxu0 0.0
        %1071 = vmatpush1.msra.mxu0 0.0
        %1072 = vmatprep.subr.mxu0 0.0
        %1073 = vmatpush1.msra.mxu0 0.0
        %1074 = vmatprep.subr.mxu0 0.0
        %1075 = vmatpush1.msra.mxu0 0.0
        %1076 = vmatprep.subr.mxu0 0.0
        %1077 = vmatpush1.msra.mxu0 0.0
        %1078 = vmatprep.subr.mxu0 0.0
        %1079 = vmatpush1.msra.mxu0 0.0
        %1080 = vmatprep.subr.mxu0 0.0
        %1081 = vmatpush1.msra.mxu0 0.0
        %1082 = vmatprep.subr.mxu0 0.0
        %1083 = vmatpush1.msra.mxu0 0.0
        %1084 = vmatprep.subr.mxu0 0.0
        %1085 = vmatpush1.msra.mxu0 0.0
        %1086 = vmatprep.subr.mxu0 0.0
        %1087 = vmatpush1.msra.mxu0 0.0
        %1088 = vmatprep.subr.mxu0 0.0
        %1089 = vmatpush1.msra.mxu0 0.0
        %1090 = vmatprep.subr.mxu0 0.0
        %1091 = vmatpush1.msra.mxu0 0.0
        %1092 = vmatprep.subr.mxu0 0.0
        %1093 = vmatpush1.msra.mxu0 0.0
        %1094 = vmatprep.subr.mxu0 0.0
        %1095 = vmatpush1.msra.mxu0 0.0
        %1096 = vmatprep.subr.mxu0 0.0
        %1097 = vmatpush1.msra.mxu0 0.0
        %1098 = vmatprep.subr.mxu0 0.0
        %1099 = vmatpush1.msra.mxu0 0.0
        %1100 = vmatprep.subr.mxu0 0.0
        %1101 = vmatpush1.msra.mxu0 0.0
        %1102 = vmatprep.subr.mxu0 0.0
        %1103 = vmatpush1.msra.mxu0 0.0
        %1104 = vmatprep.subr.mxu0 0.0
        %1105 = vmatpush1.msra.mxu0 0.0
        %1106 = vmatprep.subr.mxu0 0.0
        %1107 = vmatpush1.msra.mxu0 0.0
        %1108 = vmatprep.subr.mxu0 0.0
        %1109 = vmatpush1.msra.mxu0 0.0
        %1110 = vmatprep.subr.mxu0 0.0
        %1111 = vmatpush1.msra.mxu0 0.0
        %1112 = vmatprep.subr.mxu0 0.0
        %1113 = vmatpush1.msra.mxu0 0.0
        %1114 = vmatprep.subr.mxu0 0.0
        %1115 = vmatpush1.msra.mxu0 0.0
        %1116 = vmatprep.subr.mxu0 0.0
        %1117 = vmatpush1.msra.mxu0 0.0
        %1118 = vmatprep.subr.mxu0 0.0
        %1119 = vmatpush1.msra.mxu0 0.0
        %1120 = vmatprep.subr.mxu0 0.0
        %1121 = vmatpush1.msra.mxu0 0.0
        %1122 = vmatprep.subr.mxu0 0.0
        %1123 = vmatpush1.msra.mxu0 0.0
        %1124 = vmatprep.subr.mxu0 0.0
        %1125 = vmatpush1.msra.mxu0 0.0
        %1126 = vmatprep.subr.mxu0 0.0
        %1127 = vmatpush1.msra.mxu0 0.0
        %1128 = vmatprep.mubr.f32.mxu0 0.0
        %1129 = vmatmul.mubr.f32.gmra.mrb[0].mxu0 %v1062
        %v1130 = vpop.f32.mrb[0].mxu0
        %v1131 = vadd.f32 0.0, %v1130
        %v1132 = vpop.f32.mrb[0].mxu0
        %1133 = vdwg.mxu0
        %v1134 = vadd.f32 %v1056, %v1131
        %1135 = vst.msk [vmem:[%s1049] sm:$0xff] %vm358, %v1134
        %1136 = vst.msk [vmem:[%s1024] sm:$0xff] %vm458, %v1029
      $region40: #{multi_head_attention.4} parent=31 // pred_fallthru
        _
      // Predicated region
      $region41: #{multi_head_attention.4} parent=31 // pred_check
        %p1137 = pneg %p317
      $region42: #{multi_head_attention.4} parent=31 // pred_check_branch
        %1139 = sbr.rel (%p1137) target = $region44
      $region43: #{multi_head_attention.4} parent=31 // pred_region
        %v1140 = vld [vmem:[#allocation3] sm:$0xff]
        %v1141 = vrcp.pop %v1140
        %v1142 = vld [vmem:[#allocation4] sm:$0xff]
        %1144 = vset.pattern.permute.xlu0 0
        %1145 = vperm.xlu0 %1144, %v1141
        %v1146 = vpop.permute.xlu0 %1145
        %v1148 = vmul.f32 %v1142, %v1146
        %vm1149 = vcmask 130048
        %1150 = vst.msk [vmem:[%s315] sm:$0xff] %vm1149, %v1148
        %s1151 = scalar_lea.vmem [#allocation3], 8
        %v1152 = vld [vmem:[%s1151] sm:$0xff]
        %v1153 = vrcp.pop %v1152
        %s1154 = scalar_lea.vmem [#allocation4], 8
        %v1155 = vld [vmem:[%s1154] sm:$0xff]
        %1157 = vset.pattern.permute.xlu0 0
        %1158 = vperm.xlu0 %1157, %v1153
        %v1159 = vpop.permute.xlu0 %1158
        %v1161 = vmul.f32 %v1155, %v1159
        %1163 = vrot.lane.b32.xlu0 %v1161, 16
        %v1164 = vpop.permute.xlu0 %1163
        %vm1166 = vcmask 261248
        %1167 = vst.msk [vmem:[%s315] sm:$0xff] %vm1166, %v1164
        %s1168 = scalar_lea.vmem [#allocation3], 16
        %v1169 = vld [vmem:[%s1168] sm:$0xff]
        %v1170 = vrcp.pop %v1169
        %s1171 = scalar_lea.vmem [#allocation4], 16
        %v1172 = vld [vmem:[%s1171] sm:$0xff]
        %1174 = vset.pattern.permute.xlu0 0
        %1175 = vperm.xlu0 %1174, %v1170
        %v1176 = vpop.permute.xlu0 %1175
        %v1178 = vmul.f32 %v1172, %v1176
        %1180 = vrot.lane.b32.xlu0 %v1178, 32
        %v1181 = vpop.permute.xlu0 %1180
        %vm1183 = vcmask 392448
        %1184 = vst.msk [vmem:[%s315] sm:$0xff] %vm1183, %v1181
        %s1185 = scalar_lea.vmem [#allocation3], 24
        %v1186 = vld [vmem:[%s1185] sm:$0xff]
        %v1187 = vrcp.pop %v1186
        %s1188 = scalar_lea.vmem [#allocation4], 24
        %v1189 = vld [vmem:[%s1188] sm:$0xff]
        %1191 = vset.pattern.permute.xlu0 0
        %1192 = vperm.xlu0 %1191, %v1187
        %v1193 = vpop.permute.xlu0 %1192
        %v1195 = vmul.f32 %v1189, %v1193
        %1197 = vrot.lane.b32.xlu0 %v1195, 48
        %v1198 = vpop.permute.xlu0 %1197
        %vm1200 = vcmask 523648
        %1201 = vst.msk [vmem:[%s315] sm:$0xff] %vm1200, %v1198
      $region44: #{multi_head_attention.4} parent=31 // pred_fallthru
        _
      %s1202 = sadd.s32 %s20, %s22
      %p1203 = scmp.lt.s32.totalorder %s1202, 1
      %s1204 = scalar_select %p1203, %s1202, 1
      %p1205 = scmp.lt.s32.totalorder %s21, 0
      %s1206 = scalar_select %p1205, %s21, 0
      %s1207 = sadd.s32 %s1206, %s1204
      %s1208 = smul.addr %s1207, 8
      %s1209 = scalar_lea.vmem %s3, %s1208
      // Predicated region
      $region45: #{multi_head_attention.4} parent=31 // pred_check
        %p1210 = pneg %p152
      $region46: #{multi_head_attention.4} parent=31 // pred_check_branch
        %1212 = sbr.rel (%p1210) target = $region48
      $region47: #{multi_head_attention.4} parent=31 // pred_region
        %s1213 = sadd.s32 %s20, %s22
      $region48: #{multi_head_attention.4} parent=31 // pred_fallthru
        _
    $region32: #{multi_head_attention.4} parent=5 // pred_fallthru
      _
    %p1214 = scmp.le.s32.totalorder 2, %s9
    // Predicated region
    $region49: #{multi_head_attention.4} parent=5 // pred_check
      %p1215 = pneg %p1214
    $region50: #{multi_head_attention.4} parent=5 // pred_check_branch
      %1217 = sbr.rel (%p1215) target = $region52
    $region51: #{multi_head_attention.4} parent=5 // pred_region
      %s1218 = ssub.s32 %s9, 2
      // Predicated region
      $region53: #{multi_head_attention.4} parent=51 // pred_check
        %p1219 = pneg %p158
      $region54: #{multi_head_attention.4} parent=51 // pred_check_branch
        %1221 = sbr.rel (%p1219) target = $region56
      $region55: #{multi_head_attention.4} parent=51 // pred_region
        %s1222 = sadd.s32 %s24, %s26
        %p1223 = scmp.lt.s32.totalorder %s1222, 1
        %s1224 = scalar_select %p1223, %s1222, 1
        %p1225 = scmp.lt.s32.totalorder %s25, 0
        %s1226 = scalar_select %p1225, %s25, 0
        %s1227 = sadd.s32 %s1226, %s1224
        %s1228 = smul.addr %s1227, 8
        %s1229 = scalar_lea.vmem %s3, %s1228
      $region56: #{multi_head_attention.4} parent=51 // pred_fallthru
        _
    $region52: #{multi_head_attention.4} parent=5 // pred_fallthru
      _
  $region6: #{multi_head_attention.4} parent=0 // loop_footer
    %s13 = sadd.s32 1, %s9
  $region7: #{multi_head_attention.4} parent=0 // loop_footer_branch
    %8 = sbr.rel target = $region3
  $region8: #{multi_head_attention.4} parent=0 // loop_exit
    _

</llo_original>
